<compile_context>
chip_gen: v7x
topology: tpu7x:2x2x1
jax: 0.10.0
libtpu: 0.0.40
codegen_flags: <defaults>
</compile_context>

<pallas_src>
import functools

import jax
import jax.numpy as jnp
from jax import lax
from jax.experimental import pallas as pl
from jax.experimental.pallas import tpu as pltpu

EPS = 1e-5  # PyTorch BatchNorm2d default eps


# -----------------------------------------------------------------------------
# Pallas kernel: one batch block per grid step, all work on (C, BB*F*T) slabs.
# -----------------------------------------------------------------------------
def _tfsc_kernel(T_,
                 x_ref, wt_ref, bt_ref,
                 wfdw_ref, bfdw_ref, mf_ref, wfpw_ref, bfpw_ref,
                 wtdw_ref, btdw_ref, mt_ref, wtpw_ref, btpw_ref,
                 sf_ref, sft_ref, st_ref, stt_ref,
                 o_ref):
    half = wfpw_ref.shape[0]
    K = mf_ref.shape[0]
    pad = (K - 1) // 2
    N = x_ref.shape[-1]            # = BB * F * T (batch folded into lanes)

    # ---- trans 1x1 conv + BN + ReLU; channel shuffle folded into wt rows.
    #      One dense (Cout, Cin) x (Cin, N) MXU dot for the whole batch block.
    y = jnp.maximum(
        jnp.dot(wt_ref[...], x_ref[...], preferred_element_type=jnp.float32)
        + bt_ref[...], 0.0)                                      # (Cout, N) f32
    x1 = y[:half]                                                # freq branch
    x2 = y[half:]                                                # temp branch

    # ---- branch 1: depthwise conv along F as K roll-taps (shift = d*T),
    #      batch/edge wrap neutralised by 0/1 masks; BN+ReLU; sum over F via
    #      bf16 selector matmul (1/F folded into wfpw); 1x1 conv + BN + ReLU
    #      (dropout = identity); broadcast back over F via selector^T.
    acc1 = x1 * wfdw_ref[pad]                                    # centre tap
    for k in range(K):
        if k == pad:
            continue
        shift = (-(k - pad) * T_) % N
        tap = wfdw_ref[k] * mf_ref[k].astype(jnp.float32)        # (half, N)
        acc1 = acc1 + pltpu.roll(x1, shift=shift, axis=1) * tap
    v1 = jnp.maximum(acc1 + bfdw_ref[...], 0.0)                  # (half, N)
    s1 = jnp.dot(v1, sf_ref[...].astype(jnp.float32),
                 preferred_element_type=jnp.float32)             # (half, BB*T)
    p1 = jnp.maximum(
        jnp.dot(wfpw_ref[...], s1, preferred_element_type=jnp.float32)
        + bfpw_ref[...], 0.0)
    d1 = jnp.dot(p1, sft_ref[...].astype(jnp.float32),
                 preferred_element_type=jnp.float32)             # (half, N)

    # ---- branch 2: same along T (shift = d).
    acc2 = x2 * wtdw_ref[pad]
    for k in range(K):
        if k == pad:
            continue
        shift = (-(k - pad)) % N
        tap = wtdw_ref[k] * mt_ref[k].astype(jnp.float32)
        acc2 = acc2 + pltpu.roll(x2, shift=shift, axis=1) * tap
    v2 = jnp.maximum(acc2 + btdw_ref[...], 0.0)
    s2 = jnp.dot(v2, st_ref[...].astype(jnp.float32),
                 preferred_element_type=jnp.float32)             # (half, BB*F)
    p2 = jnp.maximum(
        jnp.dot(wtpw_ref[...], s2, preferred_element_type=jnp.float32)
        + btpw_ref[...], 0.0)
    d2 = jnp.dot(p2, stt_ref[...].astype(jnp.float32),
                 preferred_element_type=jnp.float32)             # (half, N)

    # ---- residual add on the full slab + single dense (Cout, N) store.
    out = y + jnp.concatenate([d1, d2], axis=0)
    o_ref[...] = out.astype(o_ref.dtype)


# -----------------------------------------------------------------------------
# Glue: BN / shuffle / mean folding, masks, selectors, pallas_call wrapper.
# -----------------------------------------------------------------------------
def _bn_fold(gamma, beta, mean, var):
    scale = gamma / jnp.sqrt(var + EPS)
    return scale, beta - mean * scale


def tfsc_forward(x, params):
    """x: (B, Cin, F, T) float32 or bfloat16.  params: PyTorch-layout weights."""
    B, Cin, F_, T_ = x.shape
    FT = F_ * T_
    io_dtype = x.dtype
    itemsize = jnp.dtype(io_dtype).itemsize

    f32 = lambda a: a.astype(jnp.float32)
    col = lambda v: f32(v).reshape(-1, 1)

    # ---- trans 1x1 conv: BN scale folded into weights, channel shuffle folded
    #      into the row permutation.  Weights in the I/O dtype for bf16 MXU.
    wt = f32(params['trans_w'][:, :, 0, 0])                        # (Cout, Cin)
    sc_t, bs_t = _bn_fold(*params['trans_bn'])
    Cout = wt.shape[0]
    half = Cout // 2
    wt = wt * sc_t[:, None]
    perm = jnp.array([(j % 2) * half + (j // 2) for j in range(Cout)], jnp.int32)
    wt = wt[perm].astype(io_dtype)
    bt = col(bs_t[perm])

    # ---- batch blocking: ~4 MiB of input per grid step; keep lane width a
    #      multiple of 128; bound the (BB-scaled) selector footprint.
    per_batch_in = Cin * FT * itemsize
    BB = int(max(1, min(B, (4 << 20) // max(per_batch_in, 1))))
    sel_bytes = lambda bb: 4 * bb * bb * FT * (F_ + T_)            # 4 bf16 selectors
    while BB > 1 and sel_bytes(BB) > (8 << 20):
        BB -= 1
    while B % BB != 0:
        BB -= 1
    if (BB * FT) % 128 != 0:
        BB = B                       # fall back to one block covering the batch
    NB = BB * FT
    grid = (B // BB,)

    # ---- per-position indices for the flattened (b, f, t) lane axis.
    n = jnp.arange(NB)
    f_of_n = (n % FT) // T_
    t_of_n = n % T_
    b_of_n = n // FT

    # ---- freq depthwise: (K, half, 1) BN-folded weights + (K, 1, NB) bf16
    #      edge masks (taps formed in-kernel).
    wfdw = f32(params['freq_dw_w'][:, 0, :, 0])                    # (half, K)
    sfdw, bfdw = _bn_fold(*params['freq_dw_bn'])
    wfdw = wfdw * sfdw[:, None]
    K = wfdw.shape[1]
    pad = (K - 1) // 2
    wfdw3 = wfdw.T[:, :, None]                                     # (K, half, 1)
    mfreq = jnp.stack([((f_of_n + (k - pad) >= 0) & (f_of_n + (k - pad) < F_))
                       for k in range(K)]).astype(jnp.bfloat16)[:, None, :]

    wfpw = f32(params['freq_pw_w'][:, :, 0, 0])                    # (half, half)
    sfpw, bfpw_b = _bn_fold(*params['freq_pw_bn'])
    wfpw = wfpw * sfpw[:, None] / F_          # fold BN scale and 1/F of mean()
    bfpw = col(bfpw_b)

    # ---- temporal depthwise.
    wtdw = f32(params['temp_dw_w'][:, 0, 0, :])                    # (half, K)
    stdw, btdw = _bn_fold(*params['temp_dw_bn'])
    wtdw = wtdw * stdw[:, None]
    wtdw3 = wtdw.T[:, :, None]
    mtemp = jnp.stack([((t_of_n + (k - pad) >= 0) & (t_of_n + (k - pad) < T_))
                       for k in range(K)]).astype(jnp.bfloat16)[:, None, :]

    wtpw = f32(params['temp_pw_w'][:, :, 0, 0])
    stpw, btpw_b = _bn_fold(*params['temp_pw_bn'])
    wtpw = wtpw * stpw[:, None] / T_          # fold BN scale and 1/T of mean()
    btpw = col(btpw_b)

    # ---- 0/1 sum / broadcast selectors (block-diagonal over the BB batch
    #      sub-blocks); bf16 is exact for 0/1 values.
    mt = jnp.arange(BB * T_)
    sf = ((b_of_n[:, None] == (mt // T_)[None, :]) &
          (t_of_n[:, None] == (mt % T_)[None, :])).astype(jnp.bfloat16)  # (NB, BB*T)
    mf = jnp.arange(BB * F_)
    st = ((b_of_n[:, None] == (mf // F_)[None, :]) &
          (f_of_n[:, None] == (mf % F_)[None, :])).astype(jnp.bfloat16)  # (NB, BB*F)
    sft, stt = sf.T, st.T

    const_args = (wt, bt,
                  wfdw3, col(bfdw), mfreq, wfpw, bfpw,
                  wtdw3, col(btdw), mtemp, wtpw, btpw,
                  sf, sft, st, stt)

    # ---- generation-aware VMEM budget (constants counted at real size).
    try:
        cap = int(0.7 * pltpu.get_tpu_info().vmem_capacity_bytes)
    except Exception:
        cap = 48 << 20
    const_bytes = sum(int(a.size) * jnp.dtype(a.dtype).itemsize for a in const_args)
    io_block_bytes = (Cin + Cout) * NB * itemsize
    live_bytes = 12 * Cout * NB * 4 + 2 * sel_bytes(BB)   # f32 slabs + selector upcasts
    vmem_limit = int(min(max(2 * (2 * (const_bytes + io_block_bytes) + live_bytes),
                             16 << 20),
                         max(cap, 16 << 20)))

    def _const_spec(a):
        nd = a.ndim
        return pl.BlockSpec(a.shape, lambda i, nd=nd: (0,) * nd)

    # Channel-major, lane-dense HBM layout: x -> (Cin, B*F*T), out -> (Cout, B*F*T).
    x_cm = x.transpose(1, 0, 2, 3).reshape(Cin, B * FT)

    out_cm = pl.pallas_call(
        functools.partial(_tfsc_kernel, T_),
        out_shape=jax.ShapeDtypeStruct((Cout, B * FT), io_dtype),
        grid=grid,
        in_specs=[pl.BlockSpec((Cin, NB), lambda i: (0, i))]
                 + [_const_spec(a) for a in const_args],
        out_specs=pl.BlockSpec((Cout, NB), lambda i: (0, i)),
        compiler_params=pltpu.CompilerParams(
            dimension_semantics=("parallel",),
            vmem_limit_bytes=vmem_limit),
    )(x_cm, *const_args)

    return out_cm.reshape(Cout, B, F_, T_).transpose(1, 0, 2, 3)


# -----------------------------------------------------------------------------
# Independent pure-JAX reference (lax.conv_general_dilated, NCHW / OIHW).
# -----------------------------------------------------------------------------
def _conv2d(x, w, padding=(0, 0), groups=1):
    return lax.conv_general_dilated(
        x, w, window_strides=(1, 1),
        padding=[(padding[0], padding[0]), (padding[1], padding[1])],
        feature_group_count=groups,
        dimension_numbers=('NCHW', 'OIHW', 'NCHW'))


def _bn_eval(x, gamma, beta, mean, var):
    return (gamma[None, :, None, None] * (x - mean[None, :, None, None])
            / jnp.sqrt(var[None, :, None, None] + EPS)
            + beta[None, :, None, None])


def ref_forward(x, p):
    def cbr(h, w, bn, padding=(0, 0), groups=1):
        h = _conv2d(h, w, padding=padding, groups=groups)
        h = _bn_eval(h, *bn)
        return jnp.maximum(h, 0.0)

    y = cbr(x, p['trans_w'], p['trans_bn'])
    b, c, f, t = y.shape
    half = c // 2
    # ShuffleLayer(group=half): reshape(b, 2, half, f, t) -> permute -> reshape
    y = y.reshape(b, 2, half, f, t).transpose(0, 2, 1, 3, 4).reshape(b, c, f, t)
    x1, x2 = y[:, :half], y[:, half:]
    id1, id2 = x1, x2
    K = p['freq_dw_w'].shape[2]
    pad = (K - 1) // 2
    z1 = cbr(x1, p['freq_dw_w'], p['freq_dw_bn'], padding=(pad, 0), groups=half)
    z1 = z1.mean(2, keepdims=True)
    z1 = cbr(z1, p['freq_pw_w'], p['freq_pw_bn'])
    x1 = z1 + id1
    z2 = cbr(x2, p['temp_dw_w'], p['temp_dw_bn'], padding=(0, pad), groups=half)
    z2 = z2.mean(3, keepdims=True)
    z2 = cbr(z2, p['temp_pw_w'], p['temp_pw_bn'])
    x2 = z2 + id2
    return jnp.concatenate([x1, x2], axis=1)


# -----------------------------------------------------------------------------
# Deterministic parameter init (shapes from the module __init__).
# -----------------------------------------------------------------------------
def init_params(key, in_channels, out_channels, kernel_size):
    half = out_channels // 2
    keys = jax.random.split(key, 10)

    def w(k, shape, fan_in):
        bound = 1.0 / (fan_in ** 0.5)
        return jax.random.uniform(k, shape, jnp.float32, -bound, bound)

    def bn(k, c):
        k1, k2, k3 = jax.random.split(k, 3)
        gamma = 1.0 + 0.1 * jax.random.normal(k1, (c,), jnp.float32)
        beta = 0.1 * jax.random.normal(k2, (c,), jnp.float32)
        mean = 0.1 * jax.random.normal(k3, (c,), jnp.float32)
        var = 0.9 * jnp.ones((c,), jnp.float32)
        return (gamma, beta, mean, var)

    return {
        'trans_w':  w(keys[0], (out_channels, in_channels, 1, 1), in_channels),
        'trans_bn': bn(keys[1], out_channels),
        'freq_dw_w':  w(keys[2], (half, 1, kernel_size, 1), kernel_size),
        'freq_dw_bn': bn(keys[3], half),
        'freq_pw_w':  w(keys[4], (half, half, 1, 1), half),
        'freq_pw_bn': bn(keys[5], half),
        'temp_dw_w':  w(keys[6], (half, 1, 1, kernel_size), kernel_size),
        'temp_dw_bn': bn(keys[7], half),
        'temp_pw_w':  w(keys[8], (half, half, 1, 1), half),
        'temp_pw_bn': bn(keys[9], half),
    }


if __name__ == "__main__":
    key = jax.random.PRNGKey(0)
    kx, kp = jax.random.split(key)
    B, Cin, Cout, F_, T_, K = 2, 4, 8, 16, 16, 3

    x = jax.random.normal(kx, (B, Cin, F_, T_), jnp.float32)
    params = init_params(kp, Cin, Cout, K)

    # f32 HBM I/O path: strict check against the pure-JAX reference.
    out = jax.block_until_ready(tfsc_forward(x, params))
    ref = jax.block_until_ready(ref_forward(x, params))
    assert out.shape == (B, Cout, F_, T_), out.shape
    max_err = float(jnp.max(jnp.abs(out - ref)))
    assert jnp.allclose(out, ref, atol=1e-4, rtol=1e-4), max_err

    # bf16 HBM I/O path (bf16 MXU operands, f32 accumulation): loose tolerance,
    # with the reference fed the same bf16-rounded input.
    xb = x.astype(jnp.bfloat16)
    out_b = jax.block_until_ready(tfsc_forward(xb, params)).astype(jnp.float32)
    ref_b = ref_forward(xb.astype(jnp.float32), params)
    max_err_b = float(jnp.max(jnp.abs(out_b - ref_b)))
    assert jnp.allclose(out_b, ref_b, atol=4e-2, rtol=4e-2), max_err_b

    print("KERNEL_OK")
</pallas_src>

<mosaic_0001>
module attributes {stable_mosaic.version = 11 : i64} {
  func.func @_tfsc_kernel(%arg0: i32, %arg1: memref<4x512xf32, #tpu.memory_space<vmem>>, %arg2: memref<8x4xf32, #tpu.memory_space<vmem>>, %arg3: memref<8x1xf32, #tpu.memory_space<vmem>>, %arg4: memref<3x4x1xf32, #tpu.memory_space<vmem>>, %arg5: memref<4x1xf32, #tpu.memory_space<vmem>>, %arg6: memref<3x1x512xbf16, #tpu.memory_space<vmem>>, %arg7: memref<4x4xf32, #tpu.memory_space<vmem>>, %arg8: memref<4x1xf32, #tpu.memory_space<vmem>>, %arg9: memref<3x4x1xf32, #tpu.memory_space<vmem>>, %arg10: memref<4x1xf32, #tpu.memory_space<vmem>>, %arg11: memref<3x1x512xbf16, #tpu.memory_space<vmem>>, %arg12: memref<4x4xf32, #tpu.memory_space<vmem>>, %arg13: memref<4x1xf32, #tpu.memory_space<vmem>>, %arg14: memref<512x32xbf16, #tpu.memory_space<vmem>>, %arg15: memref<32x512xbf16, #tpu.memory_space<vmem>>, %arg16: memref<512x32xbf16, #tpu.memory_space<vmem>>, %arg17: memref<32x512xbf16, #tpu.memory_space<vmem>>, %arg18: memref<8x512xf32, #tpu.memory_space<vmem>>) attributes {dimension_semantics = [#tpu.dimension_semantics<parallel>], iteration_bounds = array<i64: 1>, scalar_prefetch = 0 : i64, scratch_operands = 0 : i64, tpu.core_type = #tpu.core_type<tc>, window_params = [{transform_indices = @transform_0, window_bounds = array<i64: 4, 512>}, {pipeline_mode = #tpu.pipeline_mode<synchronous>, transform_indices = @transform_1, window_bounds = array<i64: 8, 4>}, {pipeline_mode = #tpu.pipeline_mode<synchronous>, transform_indices = @transform_2, window_bounds = array<i64: 8, 1>}, {pipeline_mode = #tpu.pipeline_mode<synchronous>, transform_indices = @transform_3, window_bounds = array<i64: 3, 4, 1>}, {pipeline_mode = #tpu.pipeline_mode<synchronous>, transform_indices = @transform_4, window_bounds = array<i64: 4, 1>}, {pipeline_mode = #tpu.pipeline_mode<synchronous>, transform_indices = @transform_5, window_bounds = array<i64: 3, 1, 512>}, {pipeline_mode = #tpu.pipeline_mode<synchronous>, transform_indices = @transform_6, window_bounds = array<i64: 4, 4>}, {pipeline_mode = #tpu.pipeline_mode<synchronous>, transform_indices = @transform_7, window_bounds = array<i64: 4, 1>}, {pipeline_mode = #tpu.pipeline_mode<synchronous>, transform_indices = @transform_8, window_bounds = array<i64: 3, 4, 1>}, {pipeline_mode = #tpu.pipeline_mode<synchronous>, transform_indices = @transform_9, window_bounds = array<i64: 4, 1>}, {pipeline_mode = #tpu.pipeline_mode<synchronous>, transform_indices = @transform_10, window_bounds = array<i64: 3, 1, 512>}, {pipeline_mode = #tpu.pipeline_mode<synchronous>, transform_indices = @transform_11, window_bounds = array<i64: 4, 4>}, {pipeline_mode = #tpu.pipeline_mode<synchronous>, transform_indices = @transform_12, window_bounds = array<i64: 4, 1>}, {pipeline_mode = #tpu.pipeline_mode<synchronous>, transform_indices = @transform_13, window_bounds = array<i64: 512, 32>}, {pipeline_mode = #tpu.pipeline_mode<synchronous>, transform_indices = @transform_14, window_bounds = array<i64: 32, 512>}, {pipeline_mode = #tpu.pipeline_mode<synchronous>, transform_indices = @transform_15, window_bounds = array<i64: 512, 32>}, {pipeline_mode = #tpu.pipeline_mode<synchronous>, transform_indices = @transform_16, window_bounds = array<i64: 32, 512>}, {transform_indices = @transform_17, window_bounds = array<i64: 8, 512>}]} {
    %c0 = arith.constant 0 : index
    %c0_0 = arith.constant 0 : index
    %0 = vector.load %arg2[%c0, %c0_0] : memref<8x4xf32, #tpu.memory_space<vmem>>, vector<8x4xf32>
    %c0_1 = arith.constant 0 : index
    %c0_2 = arith.constant 0 : index
    %1 = vector.load %arg1[%c0_1, %c0_2] : memref<4x512xf32, #tpu.memory_space<vmem>>, vector<4x512xf32>
    %cst = arith.constant dense<0.000000e+00> : vector<8x512xf32>
    %2 = tpu.matmul %0, %1, %cst {dimension_numbers = #tpu.dot_dimension_numbers<[1], [0], [0], [1], [0, 0, 1, 1], [], []>} : vector<8x4xf32>, vector<4x512xf32>, vector<8x512xf32> -> vector<8x512xf32>
    %c0_3 = arith.constant 0 : index
    %c0_4 = arith.constant 0 : index
    %3 = vector.load %arg3[%c0_3, %c0_4] : memref<8x1xf32, #tpu.memory_space<vmem>>, vector<8x1xf32>
    %4 = vector.broadcast %3 : vector<8x1xf32> to vector<8x512xf32>
    %5 = arith.addf %2, %4 : vector<8x512xf32>
    %cst_5 = arith.constant 0.000000e+00 : f32
    %6 = vector.broadcast %cst_5 : f32 to vector<8x512xf32>
    %7 = arith.maximumf %5, %6 : vector<8x512xf32>
    %8 = vector.extract_strided_slice %7 {offsets = [0, 0], sizes = [4, 512], strides = [1, 1]} : vector<8x512xf32> to vector<4x512xf32>
    %9 = vector.extract_strided_slice %7 {offsets = [4, 0], sizes = [4, 512], strides = [1, 1]} : vector<8x512xf32> to vector<4x512xf32>
    %c1 = arith.constant 1 : index
    %c0_6 = arith.constant 0 : index
    %c0_7 = arith.constant 0 : index
    %10 = vector.load %arg4[%c1, %c0_6, %c0_7] : memref<3x4x1xf32, #tpu.memory_space<vmem>>, vector<1x4x1xf32>
    %11 = vector.shape_cast %10 : vector<1x4x1xf32> to vector<4x1xf32>
    %12 = vector.broadcast %11 : vector<4x1xf32> to vector<4x512xf32>
    %13 = arith.mulf %8, %12 : vector<4x512xf32>
    %c0_8 = arith.constant 0 : index
    %c0_9 = arith.constant 0 : index
    %c0_10 = arith.constant 0 : index
    %14 = vector.load %arg4[%c0_8, %c0_9, %c0_10] : memref<3x4x1xf32, #tpu.memory_space<vmem>>, vector<1x4x1xf32>
    %15 = vector.shape_cast %14 : vector<1x4x1xf32> to vector<4x1xf32>
    %c0_11 = arith.constant 0 : index
    %c0_12 = arith.constant 0 : index
    %c0_13 = arith.constant 0 : index
    %16 = vector.load %arg6[%c0_11, %c0_12, %c0_13] : memref<3x1x512xbf16, #tpu.memory_space<vmem>>, vector<1x1x512xbf16>
    %17 = vector.shape_cast %16 : vector<1x1x512xbf16> to vector<1x512xbf16>
    %18 = arith.extf %17 : vector<1x512xbf16> to vector<1x512xf32>
    %19 = vector.broadcast %15 : vector<4x1xf32> to vector<4x512xf32>
    %20 = vector.broadcast %18 : vector<1x512xf32> to vector<4x512xf32>
    %21 = arith.mulf %19, %20 : vector<4x512xf32>
    %c16_i32 = arith.constant 16 : i32
    %22 = tpu.dynamic_rotate %8 by %c16_i32 dim 1 : vector<4x512xf32>, i32 -> vector<4x512xf32>
    %23 = arith.mulf %22, %21 : vector<4x512xf32>
    %24 = arith.addf %13, %23 : vector<4x512xf32>
    %c2 = arith.constant 2 : index
    %c0_14 = arith.constant 0 : index
    %c0_15 = arith.constant 0 : index
    %25 = vector.load %arg4[%c2, %c0_14, %c0_15] : memref<3x4x1xf32, #tpu.memory_space<vmem>>, vector<1x4x1xf32>
    %26 = vector.shape_cast %25 : vector<1x4x1xf32> to vector<4x1xf32>
    %c2_16 = arith.constant 2 : index
    %c0_17 = arith.constant 0 : index
    %c0_18 = arith.constant 0 : index
    %27 = vector.load %arg6[%c2_16, %c0_17, %c0_18] : memref<3x1x512xbf16, #tpu.memory_space<vmem>>, vector<1x1x512xbf16>
    %28 = vector.shape_cast %27 : vector<1x1x512xbf16> to vector<1x512xbf16>
    %29 = arith.extf %28 : vector<1x512xbf16> to vector<1x512xf32>
    %30 = vector.broadcast %26 : vector<4x1xf32> to vector<4x512xf32>
    %31 = vector.broadcast %29 : vector<1x512xf32> to vector<4x512xf32>
    %32 = arith.mulf %30, %31 : vector<4x512xf32>
    %c496_i32 = arith.constant 496 : i32
    %33 = tpu.dynamic_rotate %8 by %c496_i32 dim 1 : vector<4x512xf32>, i32 -> vector<4x512xf32>
    %34 = arith.mulf %33, %32 : vector<4x512xf32>
    %35 = arith.addf %24, %34 : vector<4x512xf32>
    %c0_19 = arith.constant 0 : index
    %c0_20 = arith.constant 0 : index
    %36 = vector.load %arg5[%c0_19, %c0_20] : memref<4x1xf32, #tpu.memory_space<vmem>>, vector<4x1xf32>
    %37 = vector.broadcast %36 : vector<4x1xf32> to vector<4x512xf32>
    %38 = arith.addf %35, %37 : vector<4x512xf32>
    %cst_21 = arith.constant 0.000000e+00 : f32
    %39 = vector.broadcast %cst_21 : f32 to vector<4x512xf32>
    %40 = arith.maximumf %38, %39 : vector<4x512xf32>
    %c0_22 = arith.constant 0 : index
    %c0_23 = arith.constant 0 : index
    %41 = vector.load %arg14[%c0_22, %c0_23] : memref<512x32xbf16, #tpu.memory_space<vmem>>, vector<512x32xbf16>
    %42 = arith.extf %41 : vector<512x32xbf16> to vector<512x32xf32>
    %cst_24 = arith.constant dense<0.000000e+00> : vector<4x32xf32>
    %43 = tpu.matmul %40, %42, %cst_24 {dimension_numbers = #tpu.dot_dimension_numbers<[1], [0], [0], [1], [0, 0, 1, 1], [], []>} : vector<4x512xf32>, vector<512x32xf32>, vector<4x32xf32> -> vector<4x32xf32>
    %c0_25 = arith.constant 0 : index
    %c0_26 = arith.constant 0 : index
    %44 = vector.load %arg7[%c0_25, %c0_26] : memref<4x4xf32, #tpu.memory_space<vmem>>, vector<4x4xf32>
    %cst_27 = arith.constant dense<0.000000e+00> : vector<4x32xf32>
    %45 = tpu.matmul %44, %43, %cst_27 {dimension_numbers = #tpu.dot_dimension_numbers<[1], [0], [0], [1], [0, 0, 1, 1], [], []>} : vector<4x4xf32>, vector<4x32xf32>, vector<4x32xf32> -> vector<4x32xf32>
    %c0_28 = arith.constant 0 : index
    %c0_29 = arith.constant 0 : index
    %46 = vector.load %arg8[%c0_28, %c0_29] : memref<4x1xf32, #tpu.memory_space<vmem>>, vector<4x1xf32>
    %47 = vector.broadcast %46 : vector<4x1xf32> to vector<4x32xf32>
    %48 = arith.addf %45, %47 : vector<4x32xf32>
    %cst_30 = arith.constant 0.000000e+00 : f32
    %49 = vector.broadcast %cst_30 : f32 to vector<4x32xf32>
    %50 = arith.maximumf %48, %49 : vector<4x32xf32>
    %c0_31 = arith.constant 0 : index
    %c0_32 = arith.constant 0 : index
    %51 = vector.load %arg15[%c0_31, %c0_32] : memref<32x512xbf16, #tpu.memory_space<vmem>>, vector<32x512xbf16>
    %52 = arith.extf %51 : vector<32x512xbf16> to vector<32x512xf32>
    %cst_33 = arith.constant dense<0.000000e+00> : vector<4x512xf32>
    %53 = tpu.matmul %50, %52, %cst_33 {dimension_numbers = #tpu.dot_dimension_numbers<[1], [0], [0], [1], [0, 0, 1, 1], [], []>} : vector<4x32xf32>, vector<32x512xf32>, vector<4x512xf32> -> vector<4x512xf32>
    %c1_34 = arith.constant 1 : index
    %c0_35 = arith.constant 0 : index
    %c0_36 = arith.constant 0 : index
    %54 = vector.load %arg9[%c1_34, %c0_35, %c0_36] : memref<3x4x1xf32, #tpu.memory_space<vmem>>, vector<1x4x1xf32>
    %55 = vector.shape_cast %54 : vector<1x4x1xf32> to vector<4x1xf32>
    %56 = vector.broadcast %55 : vector<4x1xf32> to vector<4x512xf32>
    %57 = arith.mulf %9, %56 : vector<4x512xf32>
    %c0_37 = arith.constant 0 : index
    %c0_38 = arith.constant 0 : index
    %c0_39 = arith.constant 0 : index
    %58 = vector.load %arg9[%c0_37, %c0_38, %c0_39] : memref<3x4x1xf32, #tpu.memory_space<vmem>>, vector<1x4x1xf32>
    %59 = vector.shape_cast %58 : vector<1x4x1xf32> to vector<4x1xf32>
    %c0_40 = arith.constant 0 : index
    %c0_41 = arith.constant 0 : index
    %c0_42 = arith.constant 0 : index
    %60 = vector.load %arg11[%c0_40, %c0_41, %c0_42] : memref<3x1x512xbf16, #tpu.memory_space<vmem>>, vector<1x1x512xbf16>
    %61 = vector.shape_cast %60 : vector<1x1x512xbf16> to vector<1x512xbf16>
    %62 = arith.extf %61 : vector<1x512xbf16> to vector<1x512xf32>
    %63 = vector.broadcast %59 : vector<4x1xf32> to vector<4x512xf32>
    %64 = vector.broadcast %62 : vector<1x512xf32> to vector<4x512xf32>
    %65 = arith.mulf %63, %64 : vector<4x512xf32>
    %c1_i32 = arith.constant 1 : i32
    %66 = tpu.dynamic_rotate %9 by %c1_i32 dim 1 : vector<4x512xf32>, i32 -> vector<4x512xf32>
    %67 = arith.mulf %66, %65 : vector<4x512xf32>
    %68 = arith.addf %57, %67 : vector<4x512xf32>
    %c2_43 = arith.constant 2 : index
    %c0_44 = arith.constant 0 : index
    %c0_45 = arith.constant 0 : index
    %69 = vector.load %arg9[%c2_43, %c0_44, %c0_45] : memref<3x4x1xf32, #tpu.memory_space<vmem>>, vector<1x4x1xf32>
    %70 = vector.shape_cast %69 : vector<1x4x1xf32> to vector<4x1xf32>
    %c2_46 = arith.constant 2 : index
    %c0_47 = arith.constant 0 : index
    %c0_48 = arith.constant 0 : index
    %71 = vector.load %arg11[%c2_46, %c0_47, %c0_48] : memref<3x1x512xbf16, #tpu.memory_space<vmem>>, vector<1x1x512xbf16>
    %72 = vector.shape_cast %71 : vector<1x1x512xbf16> to vector<1x512xbf16>
    %73 = arith.extf %72 : vector<1x512xbf16> to vector<1x512xf32>
    %74 = vector.broadcast %70 : vector<4x1xf32> to vector<4x512xf32>
    %75 = vector.broadcast %73 : vector<1x512xf32> to vector<4x512xf32>
    %76 = arith.mulf %74, %75 : vector<4x512xf32>
    %c511_i32 = arith.constant 511 : i32
    %77 = tpu.dynamic_rotate %9 by %c511_i32 dim 1 : vector<4x512xf32>, i32 -> vector<4x512xf32>
    %78 = arith.mulf %77, %76 : vector<4x512xf32>
    %79 = arith.addf %68, %78 : vector<4x512xf32>
    %c0_49 = arith.constant 0 : index
    %c0_50 = arith.constant 0 : index
    %80 = vector.load %arg10[%c0_49, %c0_50] : memref<4x1xf32, #tpu.memory_space<vmem>>, vector<4x1xf32>
    %81 = vector.broadcast %80 : vector<4x1xf32> to vector<4x512xf32>
    %82 = arith.addf %79, %81 : vector<4x512xf32>
    %cst_51 = arith.constant 0.000000e+00 : f32
    %83 = vector.broadcast %cst_51 : f32 to vector<4x512xf32>
    %84 = arith.maximumf %82, %83 : vector<4x512xf32>
    %c0_52 = arith.constant 0 : index
    %c0_53 = arith.constant 0 : index
    %85 = vector.load %arg16[%c0_52, %c0_53] : memref<512x32xbf16, #tpu.memory_space<vmem>>, vector<512x32xbf16>
    %86 = arith.extf %85 : vector<512x32xbf16> to vector<512x32xf32>
    %cst_54 = arith.constant dense<0.000000e+00> : vector<4x32xf32>
    %87 = tpu.matmul %84, %86, %cst_54 {dimension_numbers = #tpu.dot_dimension_numbers<[1], [0], [0], [1], [0, 0, 1, 1], [], []>} : vector<4x512xf32>, vector<512x32xf32>, vector<4x32xf32> -> vector<4x32xf32>
    %c0_55 = arith.constant 0 : index
    %c0_56 = arith.constant 0 : index
    %88 = vector.load %arg12[%c0_55, %c0_56] : memref<4x4xf32, #tpu.memory_space<vmem>>, vector<4x4xf32>
    %cst_57 = arith.constant dense<0.000000e+00> : vector<4x32xf32>
    %89 = tpu.matmul %88, %87, %cst_57 {dimension_numbers = #tpu.dot_dimension_numbers<[1], [0], [0], [1], [0, 0, 1, 1], [], []>} : vector<4x4xf32>, vector<4x32xf32>, vector<4x32xf32> -> vector<4x32xf32>
    %c0_58 = arith.constant 0 : index
    %c0_59 = arith.constant 0 : index
    %90 = vector.load %arg13[%c0_58, %c0_59] : memref<4x1xf32, #tpu.memory_space<vmem>>, vector<4x1xf32>
    %91 = vector.broadcast %90 : vector<4x1xf32> to vector<4x32xf32>
    %92 = arith.addf %89, %91 : vector<4x32xf32>
    %cst_60 = arith.constant 0.000000e+00 : f32
    %93 = vector.broadcast %cst_60 : f32 to vector<4x32xf32>
    %94 = arith.maximumf %92, %93 : vector<4x32xf32>
    %c0_61 = arith.constant 0 : index
    %c0_62 = arith.constant 0 : index
    %95 = vector.load %arg17[%c0_61, %c0_62] : memref<32x512xbf16, #tpu.memory_space<vmem>>, vector<32x512xbf16>
    %96 = arith.extf %95 : vector<32x512xbf16> to vector<32x512xf32>
    %cst_63 = arith.constant dense<0.000000e+00> : vector<4x512xf32>
    %97 = tpu.matmul %94, %96, %cst_63 {dimension_numbers = #tpu.dot_dimension_numbers<[1], [0], [0], [1], [0, 0, 1, 1], [], []>} : vector<4x32xf32>, vector<32x512xf32>, vector<4x512xf32> -> vector<4x512xf32>
    %98 = tpu.concatenate %53, %97 in 0 : vector<4x512xf32>, vector<4x512xf32> -> vector<8x512xf32>
    %99 = arith.addf %7, %98 : vector<8x512xf32>
    %c0_64 = arith.constant 0 : index
    %c0_65 = arith.constant 0 : index
    %100 = vector.load %arg18[%c0_64, %c0_65] : memref<8x512xf32, #tpu.memory_space<vmem>>, vector<8x512xf32>
    tpu.vector_store %arg18[%c0_64, %c0_65], %99 {strides = array<i32>} : memref<8x512xf32, #tpu.memory_space<vmem>>, vector<8x512xf32>,
    return
  }
  func.func @transform_0(%arg0: i32) -> (i32, i32) {
    %c0_i32 = arith.constant 0 : i32
    %c0_i32_0 = arith.constant 0 : i32
    return %c0_i32, %arg0 : i32, i32
  }
  func.func @transform_1(%arg0: i32) -> (i32, i32) {
    %c0_i32 = arith.constant 0 : i32
    %c0_i32_0 = arith.constant 0 : i32
    %c0_i32_1 = arith.constant 0 : i32
    return %c0_i32, %c0_i32_0 : i32, i32
  }
  func.func @transform_2(%arg0: i32) -> (i32, i32) {
    %c0_i32 = arith.constant 0 : i32
    %c0_i32_0 = arith.constant 0 : i32
    %c0_i32_1 = arith.constant 0 : i32
    return %c0_i32, %c0_i32_0 : i32, i32
  }
  func.func @transform_3(%arg0: i32) -> (i32, i32, i32) {
    %c0_i32 = arith.constant 0 : i32
    %c0_i32_0 = arith.constant 0 : i32
    %c0_i32_1 = arith.constant 0 : i32
    %c0_i32_2 = arith.constant 0 : i32
    return %c0_i32, %c0_i32_0, %c0_i32_1 : i32, i32, i32
  }
  func.func @transform_4(%arg0: i32) -> (i32, i32) {
    %c0_i32 = arith.constant 0 : i32
    %c0_i32_0 = arith.constant 0 : i32
    %c0_i32_1 = arith.constant 0 : i32
    return %c0_i32, %c0_i32_0 : i32, i32
  }
  func.func @transform_5(%arg0: i32) -> (i32, i32, i32) {
    %c0_i32 = arith.constant 0 : i32
    %c0_i32_0 = arith.constant 0 : i32
    %c0_i32_1 = arith.constant 0 : i32
    %c0_i32_2 = arith.constant 0 : i32
    return %c0_i32, %c0_i32_0, %c0_i32_1 : i32, i32, i32
  }
  func.func @transform_6(%arg0: i32) -> (i32, i32) {
    %c0_i32 = arith.constant 0 : i32
    %c0_i32_0 = arith.constant 0 : i32
    %c0_i32_1 = arith.constant 0 : i32
    return %c0_i32, %c0_i32_0 : i32, i32
  }
  func.func @transform_7(%arg0: i32) -> (i32, i32) {
    %c0_i32 = arith.constant 0 : i32
    %c0_i32_0 = arith.constant 0 : i32
    %c0_i32_1 = arith.constant 0 : i32
    return %c0_i32, %c0_i32_0 : i32, i32
  }
  func.func @transform_8(%arg0: i32) -> (i32, i32, i32) {
    %c0_i32 = arith.constant 0 : i32
    %c0_i32_0 = arith.constant 0 : i32
    %c0_i32_1 = arith.constant 0 : i32
    %c0_i32_2 = arith.constant 0 : i32
    return %c0_i32, %c0_i32_0, %c0_i32_1 : i32, i32, i32
  }
  func.func @transform_9(%arg0: i32) -> (i32, i32) {
    %c0_i32 = arith.constant 0 : i32
    %c0_i32_0 = arith.constant 0 : i32
    %c0_i32_1 = arith.constant 0 : i32
    return %c0_i32, %c0_i32_0 : i32, i32
  }
  func.func @transform_10(%arg0: i32) -> (i32, i32, i32) {
    %c0_i32 = arith.constant 0 : i32
    %c0_i32_0 = arith.constant 0 : i32
    %c0_i32_1 = arith.constant 0 : i32
    %c0_i32_2 = arith.constant 0 : i32
    return %c0_i32, %c0_i32_0, %c0_i32_1 : i32, i32, i32
  }
  func.func @transform_11(%arg0: i32) -> (i32, i32) {
    %c0_i32 = arith.constant 0 : i32
    %c0_i32_0 = arith.constant 0 : i32
    %c0_i32_1 = arith.constant 0 : i32
    return %c0_i32, %c0_i32_0 : i32, i32
  }
  func.func @transform_12(%arg0: i32) -> (i32, i32) {
    %c0_i32 = arith.constant 0 : i32
    %c0_i32_0 = arith.constant 0 : i32
    %c0_i32_1 = arith.constant 0 : i32
    return %c0_i32, %c0_i32_0 : i32, i32
  }
  func.func @transform_13(%arg0: i32) -> (i32, i32) {
    %c0_i32 = arith.constant 0 : i32
    %c0_i32_0 = arith.constant 0 : i32
    %c0_i32_1 = arith.constant 0 : i32
    return %c0_i32, %c0_i32_0 : i32, i32
  }
  func.func @transform_14(%arg0: i32) -> (i32, i32) {
    %c0_i32 = arith.constant 0 : i32
    %c0_i32_0 = arith.constant 0 : i32
    %c0_i32_1 = arith.constant 0 : i32
    return %c0_i32, %c0_i32_0 : i32, i32
  }
  func.func @transform_15(%arg0: i32) -> (i32, i32) {
    %c0_i32 = arith.constant 0 : i32
    %c0_i32_0 = arith.constant 0 : i32
    %c0_i32_1 = arith.constant 0 : i32
    return %c0_i32, %c0_i32_0 : i32, i32
  }
  func.func @transform_16(%arg0: i32) -> (i32, i32) {
    %c0_i32 = arith.constant 0 : i32
    %c0_i32_0 = arith.constant 0 : i32
    %c0_i32_1 = arith.constant 0 : i32
    return %c0_i32, %c0_i32_0 : i32, i32
  }
  func.func @transform_17(%arg0: i32) -> (i32, i32) {
    %c0_i32 = arith.constant 0 : i32
    %c0_i32_0 = arith.constant 0 : i32
    return %c0_i32, %arg0 : i32, i32
  }
}

</mosaic_0001>

<llo_original>
// kernel: tpu_custom_call.1
$region0: #{tpu_custom_call.1}
  #allocation0 [shape = 'u32[]', space=smem, size = 0x4, offset = 0x4, fixed_abs, tag = 'smem constant byte address 0x4 - core index']
  #allocation1 [shape = 'u32[144,128]{1,0:T(1,128)}', space=vmem, size = 0x12000, scoped, tag = 'internal scratch']
  %s0 = inlined_call_operand.vmem [shape: f32[4,512], index: 0, kind: input, shape index: {}]
  %s1 = inlined_call_operand.vmem [shape: f32[8,4], index: 1, kind: input, shape index: {}]
  %s2 = inlined_call_operand.vmem [shape: f32[8,1], index: 2, kind: input, shape index: {}]
  %s3 = inlined_call_operand.vmem [shape: f32[3,4,1], index: 3, kind: input, shape index: {}]
  %s4 = inlined_call_operand.vmem [shape: f32[4,1], index: 4, kind: input, shape index: {}]
  %s5 = inlined_call_operand.vmem [shape: bf16[3,1,512], index: 5, kind: input, shape index: {}]
  %s6 = inlined_call_operand.vmem [shape: f32[4,4], index: 6, kind: input, shape index: {}]
  %s7 = inlined_call_operand.vmem [shape: f32[4,1], index: 7, kind: input, shape index: {}]
  %s8 = inlined_call_operand.vmem [shape: f32[3,4,1], index: 8, kind: input, shape index: {}]
  %s9 = inlined_call_operand.vmem [shape: f32[4,1], index: 9, kind: input, shape index: {}]
  %s10 = inlined_call_operand.vmem [shape: bf16[3,1,512], index: 10, kind: input, shape index: {}]
  %s11 = inlined_call_operand.vmem [shape: f32[4,4], index: 11, kind: input, shape index: {}]
  %s12 = inlined_call_operand.vmem [shape: f32[4,1], index: 12, kind: input, shape index: {}]
  %s13 = inlined_call_operand.vmem [shape: bf16[512,32], index: 13, kind: input, shape index: {}]
  %s14 = inlined_call_operand.vmem [shape: bf16[32,512], index: 14, kind: input, shape index: {}]
  %s15 = inlined_call_operand.vmem [shape: bf16[512,32], index: 15, kind: input, shape index: {}]
  %s16 = inlined_call_operand.vmem [shape: bf16[32,512], index: 16, kind: input, shape index: {}]
  %s17 = inlined_call_operand.hbm [shape: f32[8,512], index: 17, kind: output, shape index: {}]
  %s18 = sld [smem:[#allocation0]]
  $region78: #{tpu_custom_call.1} parent=0
    _
  %s20 = ssub.s32 1, %s18
  %s21 = scalar_select 0, %s20, %s18
  $region1: #{tpu_custom_call.1} parent=0
    #allocation2 [shape = 'u8[16384]{0}', space=vmem, size = 0x4000, scoped, tag = 'output window, operand 0, single buffered']
    #allocation3 [shape = 's32[1]{0}', space=sflag, size = 0x4, scoped, tag = 'scoped memory for tpu_custom_call.1']
    %22 = vsyncpa [#allocation3], 0
    // Predicated region
    $region2: #{tpu_custom_call.1} parent=1 // pred_check
      _
    $region3: #{tpu_custom_call.1} parent=1 // pred_check_branch
      %24 = sbr.rel (0) target = $region5
    $region4: #{tpu_custom_call.1} parent=1 // pred_region
      _
    $region5: #{tpu_custom_call.1} parent=1 // pred_fallthru
      _
    // Predicated region
    $region6: #{tpu_custom_call.1} parent=1 // pred_check
      _
    $region7: #{tpu_custom_call.1} parent=1 // pred_check_branch
      %26 = sbr.rel (0) target = $region9
    $region8: #{tpu_custom_call.1} parent=1 // pred_region
      _
    $region9: #{tpu_custom_call.1} parent=1 // pred_fallthru
      _
    // Predicated region
    $region10: #{tpu_custom_call.1} parent=1 // pred_check
      _
    $region11: #{tpu_custom_call.1} parent=1 // pred_check_branch
      %28 = sbr.rel (0) target = $region13
    $region12: #{tpu_custom_call.1} parent=1 // pred_region
      _
    $region13: #{tpu_custom_call.1} parent=1 // pred_fallthru
      _
    // Predicated region
    $region14: #{tpu_custom_call.1} parent=1 // pred_check
      _
    $region15: #{tpu_custom_call.1} parent=1 // pred_check_branch
      %30 = sbr.rel (0) target = $region17
    $region16: #{tpu_custom_call.1} parent=1 // pred_region
      _
    $region17: #{tpu_custom_call.1} parent=1 // pred_fallthru
      _
    // Predicated region
    $region18: #{tpu_custom_call.1} parent=1 // pred_check
      _
    $region19: #{tpu_custom_call.1} parent=1 // pred_check_branch
      %32 = sbr.rel (0) target = $region21
    $region20: #{tpu_custom_call.1} parent=1 // pred_region
      _
    $region21: #{tpu_custom_call.1} parent=1 // pred_fallthru
      _
    // Predicated region
    $region22: #{tpu_custom_call.1} parent=1 // pred_check
      _
    $region23: #{tpu_custom_call.1} parent=1 // pred_check_branch
      %34 = sbr.rel (0) target = $region25
    $region24: #{tpu_custom_call.1} parent=1 // pred_region
      _
    $region25: #{tpu_custom_call.1} parent=1 // pred_fallthru
      _
    // Predicated region
    $region26: #{tpu_custom_call.1} parent=1 // pred_check
      _
    $region27: #{tpu_custom_call.1} parent=1 // pred_check_branch
      %36 = sbr.rel (0) target = $region29
    $region28: #{tpu_custom_call.1} parent=1 // pred_region
      _
    $region29: #{tpu_custom_call.1} parent=1 // pred_fallthru
      _
    // Predicated region
    $region30: #{tpu_custom_call.1} parent=1 // pred_check
      _
    $region31: #{tpu_custom_call.1} parent=1 // pred_check_branch
      %38 = sbr.rel (0) target = $region33
    $region32: #{tpu_custom_call.1} parent=1 // pred_region
      _
    $region33: #{tpu_custom_call.1} parent=1 // pred_fallthru
      _
    // Predicated region
    $region34: #{tpu_custom_call.1} parent=1 // pred_check
      _
    $region35: #{tpu_custom_call.1} parent=1 // pred_check_branch
      %40 = sbr.rel (0) target = $region37
    $region36: #{tpu_custom_call.1} parent=1 // pred_region
      _
    $region37: #{tpu_custom_call.1} parent=1 // pred_fallthru
      _
    // Predicated region
    $region38: #{tpu_custom_call.1} parent=1 // pred_check
      _
    $region39: #{tpu_custom_call.1} parent=1 // pred_check_branch
      %42 = sbr.rel (0) target = $region41
    $region40: #{tpu_custom_call.1} parent=1 // pred_region
      _
    $region41: #{tpu_custom_call.1} parent=1 // pred_fallthru
      _
    // Predicated region
    $region42: #{tpu_custom_call.1} parent=1 // pred_check
      _
    $region43: #{tpu_custom_call.1} parent=1 // pred_check_branch
      %44 = sbr.rel (0) target = $region45
    $region44: #{tpu_custom_call.1} parent=1 // pred_region
      _
    $region45: #{tpu_custom_call.1} parent=1 // pred_fallthru
      _
    // Predicated region
    $region46: #{tpu_custom_call.1} parent=1 // pred_check
      _
    $region47: #{tpu_custom_call.1} parent=1 // pred_check_branch
      %46 = sbr.rel (0) target = $region49
    $region48: #{tpu_custom_call.1} parent=1 // pred_region
      _
    $region49: #{tpu_custom_call.1} parent=1 // pred_fallthru
      _
    // Predicated region
    $region50: #{tpu_custom_call.1} parent=1 // pred_check
      _
    $region51: #{tpu_custom_call.1} parent=1 // pred_check_branch
      %48 = sbr.rel (0) target = $region53
    $region52: #{tpu_custom_call.1} parent=1 // pred_region
      _
    $region53: #{tpu_custom_call.1} parent=1 // pred_fallthru
      _
    // Predicated region
    $region54: #{tpu_custom_call.1} parent=1 // pred_check
      _
    $region55: #{tpu_custom_call.1} parent=1 // pred_check_branch
      %50 = sbr.rel (0) target = $region57
    $region56: #{tpu_custom_call.1} parent=1 // pred_region
      _
    $region57: #{tpu_custom_call.1} parent=1 // pred_fallthru
      _
    // Predicated region
    $region58: #{tpu_custom_call.1} parent=1 // pred_check
      _
    $region59: #{tpu_custom_call.1} parent=1 // pred_check_branch
      %52 = sbr.rel (0) target = $region61
    $region60: #{tpu_custom_call.1} parent=1 // pred_region
      _
    $region61: #{tpu_custom_call.1} parent=1 // pred_fallthru
      _
    // Predicated region
    $region62: #{tpu_custom_call.1} parent=1 // pred_check
      _
    $region63: #{tpu_custom_call.1} parent=1 // pred_check_branch
      %54 = sbr.rel (0) target = $region65
    $region64: #{tpu_custom_call.1} parent=1 // pred_region
      _
    $region65: #{tpu_custom_call.1} parent=1 // pred_fallthru
      _
    // Predicated region
    $region66: #{tpu_custom_call.1} parent=1 // pred_check
      _
    $region67: #{tpu_custom_call.1} parent=1 // pred_check_branch
      %56 = sbr.rel (0) target = $region69
    $region68: #{tpu_custom_call.1} parent=1 // pred_region
      _
    $region69: #{tpu_custom_call.1} parent=1 // pred_fallthru
      _
    %v57 = vld [vmem:[%s1] sm:$0xff]
    %v58 = vld [vmem:[%s0] sm:$0xff]
    %v59 = vld [vmem:[%s0 + $0x8] sm:$0xff]
    %v60 = vld [vmem:[%s2] sm:$0xff]
    %62 = vset.pattern.permute.xlu0 0
    %63 = vperm.xlu0 %62, %v60
    %v64 = vpop.permute.xlu0 %63
    %v68 = vcombine.high %v58, %v58
    %v69 = vcombine.high %v59, %v59
    %vm70 = vcmask 31744
    %v72 = vsel %vm70, %v57, 0
    %vm74 = vcmask 1043456
    %v75 = vsel %vm74, %v58, 0
    %v77 = vsel %vm74, %v68, 0
    %v79 = vsel %vm74, %v59, 0
    %v81 = vsel %vm74, %v69, 0
    %83 = vmatprep.subr.mxu0 %v77
    %84 = vmatpush1.msra.mxu0 %v75
    %85 = vmatprep.subr.mxu0 0.0
    %86 = vmatpush1.msra.mxu0 0.0
    %87 = vmatprep.subr.mxu0 0.0
    %88 = vmatpush1.msra.mxu0 0.0
    %89 = vmatprep.subr.mxu0 0.0
    %90 = vmatpush1.msra.mxu0 0.0
    %91 = vmatprep.subr.mxu0 0.0
    %92 = vmatpush1.msra.mxu0 0.0
    %93 = vmatprep.subr.mxu0 0.0
    %94 = vmatpush1.msra.mxu0 0.0
    %95 = vmatprep.subr.mxu0 0.0
    %96 = vmatpush1.msra.mxu0 0.0
    %97 = vmatprep.subr.mxu0 0.0
    %98 = vmatpush1.msra.mxu0 0.0
    %99 = vmatprep.subr.mxu0 0.0
    %100 = vmatpush1.msra.mxu0 0.0
    %101 = vmatprep.subr.mxu0 0.0
    %102 = vmatpush1.msra.mxu0 0.0
    %103 = vmatprep.subr.mxu0 0.0
    %104 = vmatpush1.msra.mxu0 0.0
    %105 = vmatprep.subr.mxu0 0.0
    %106 = vmatpush1.msra.mxu0 0.0
    %107 = vmatprep.subr.mxu0 0.0
    %108 = vmatpush1.msra.mxu0 0.0
    %109 = vmatprep.subr.mxu0 0.0
    %110 = vmatpush1.msra.mxu0 0.0
    %111 = vmatprep.subr.mxu0 0.0
    %112 = vmatpush1.msra.mxu0 0.0
    %113 = vmatprep.subr.mxu0 0.0
    %114 = vmatpush1.msra.mxu0 0.0
    %115 = vmatprep.subr.mxu0 0.0
    %116 = vmatpush1.msra.mxu0 0.0
    %117 = vmatprep.subr.mxu0 0.0
    %118 = vmatpush1.msra.mxu0 0.0
    %119 = vmatprep.subr.mxu0 0.0
    %120 = vmatpush1.msra.mxu0 0.0
    %121 = vmatprep.subr.mxu0 0.0
    %122 = vmatpush1.msra.mxu0 0.0
    %123 = vmatprep.subr.mxu0 0.0
    %124 = vmatpush1.msra.mxu0 0.0
    %125 = vmatprep.subr.mxu0 0.0
    %126 = vmatpush1.msra.mxu0 0.0
    %127 = vmatprep.subr.mxu0 0.0
    %128 = vmatpush1.msra.mxu0 0.0
    %129 = vmatprep.subr.mxu0 0.0
    %130 = vmatpush1.msra.mxu0 0.0
    %131 = vmatprep.subr.mxu0 0.0
    %132 = vmatpush1.msra.mxu0 0.0
    %133 = vmatprep.subr.mxu0 0.0
    %134 = vmatpush1.msra.mxu0 0.0
    %135 = vmatprep.subr.mxu0 0.0
    %136 = vmatpush1.msra.mxu0 0.0
    %137 = vmatprep.subr.mxu0 0.0
    %138 = vmatpush1.msra.mxu0 0.0
    %139 = vmatprep.subr.mxu0 0.0
    %140 = vmatpush1.msra.mxu0 0.0
    %141 = vmatprep.subr.mxu0 0.0
    %142 = vmatpush1.msra.mxu0 0.0
    %143 = vmatprep.subr.mxu0 0.0
    %144 = vmatpush1.msra.mxu0 0.0
    %145 = vmatprep.subr.mxu0 0.0
    %146 = vmatpush1.msra.mxu0 0.0
    %147 = vmatprep.mubr.f32.mxu0 0.0
    %148 = vmatmul.mubr.f32.gmra.mrb[0].mxu0 %v72
    %v149 = vpop.f32.mrb[0].mxu0
    %v150 = vadd.f32 %v64, %v149
    %v151 = vpop.f32.mrb[0].mxu0
    %v152 = vadd.f32 %v64, %v151
    %153 = vdwg.mxu0
    %154 = vmatprep.subr.mxu0 %v81
    %155 = vmatpush1.msra.mxu0 %v79
    %156 = vmatprep.subr.mxu0 0.0
    %157 = vmatpush1.msra.mxu0 0.0
    %158 = vmatprep.subr.mxu0 0.0
    %159 = vmatpush1.msra.mxu0 0.0
    %160 = vmatprep.subr.mxu0 0.0
    %161 = vmatpush1.msra.mxu0 0.0
    %162 = vmatprep.subr.mxu0 0.0
    %163 = vmatpush1.msra.mxu0 0.0
    %164 = vmatprep.subr.mxu0 0.0
    %165 = vmatpush1.msra.mxu0 0.0
    %166 = vmatprep.subr.mxu0 0.0
    %167 = vmatpush1.msra.mxu0 0.0
    %168 = vmatprep.subr.mxu0 0.0
    %169 = vmatpush1.msra.mxu0 0.0
    %170 = vmatprep.subr.mxu0 0.0
    %171 = vmatpush1.msra.mxu0 0.0
    %172 = vmatprep.subr.mxu0 0.0
    %173 = vmatpush1.msra.mxu0 0.0
    %174 = vmatprep.subr.mxu0 0.0
    %175 = vmatpush1.msra.mxu0 0.0
    %176 = vmatprep.subr.mxu0 0.0
    %177 = vmatpush1.msra.mxu0 0.0
    %178 = vmatprep.subr.mxu0 0.0
    %179 = vmatpush1.msra.mxu0 0.0
    %180 = vmatprep.subr.mxu0 0.0
    %181 = vmatpush1.msra.mxu0 0.0
    %182 = vmatprep.subr.mxu0 0.0
    %183 = vmatpush1.msra.mxu0 0.0
    %184 = vmatprep.subr.mxu0 0.0
    %185 = vmatpush1.msra.mxu0 0.0
    %186 = vmatprep.subr.mxu0 0.0
    %187 = vmatpush1.msra.mxu0 0.0
    %188 = vmatprep.subr.mxu0 0.0
    %189 = vmatpush1.msra.mxu0 0.0
    %190 = vmatprep.subr.mxu0 0.0
    %191 = vmatpush1.msra.mxu0 0.0
    %192 = vmatprep.subr.mxu0 0.0
    %193 = vmatpush1.msra.mxu0 0.0
    %194 = vmatprep.subr.mxu0 0.0
    %195 = vmatpush1.msra.mxu0 0.0
    %196 = vmatprep.subr.mxu0 0.0
    %197 = vmatpush1.msra.mxu0 0.0
    %198 = vmatprep.subr.mxu0 0.0
    %199 = vmatpush1.msra.mxu0 0.0
    %200 = vmatprep.subr.mxu0 0.0
    %201 = vmatpush1.msra.mxu0 0.0
    %202 = vmatprep.subr.mxu0 0.0
    %203 = vmatpush1.msra.mxu0 0.0
    %204 = vmatprep.subr.mxu0 0.0
    %205 = vmatpush1.msra.mxu0 0.0
    %206 = vmatprep.subr.mxu0 0.0
    %207 = vmatpush1.msra.mxu0 0.0
    %208 = vmatprep.subr.mxu0 0.0
    %209 = vmatpush1.msra.mxu0 0.0
    %210 = vmatprep.subr.mxu0 0.0
    %211 = vmatpush1.msra.mxu0 0.0
    %212 = vmatprep.subr.mxu0 0.0
    %213 = vmatpush1.msra.mxu0 0.0
    %214 = vmatprep.subr.mxu0 0.0
    %215 = vmatpush1.msra.mxu0 0.0
    %216 = vmatprep.subr.mxu0 0.0
    %217 = vmatpush1.msra.mxu0 0.0
    %218 = vmatprep.mubr.f32.mxu0 0.0
    %219 = vmatmul.mubr.f32.gmra.mrb[0].mxu0 %v72
    %v220 = vpop.f32.mrb[0].mxu0
    %v221 = vadd.f32 %v64, %v220
    %v222 = vpop.f32.mrb[0].mxu0
    %v223 = vadd.f32 %v64, %v222
    %224 = vdwg.mxu0
    %v225 = vmax.f32 %v150, 0.0
    %v226 = vmax.f32 %v152, 0.0
    %v227 = vmax.f32 %v221, 0.0
    %v228 = vmax.f32 %v223, 0.0
    %s229 = scalar_lea.vmem %s3, 4
    %v230 = vld [vmem:[%s229] sm:$0xf]
    %232 = vset.pattern.permute.xlu0 0
    %233 = vperm.xlu0 %232, %v230
    %v234 = vpop.permute.xlu0 %233
    %v236 = vmul.f32 %v225, %v234
    %v237 = vmul.f32 %v226, %v234
    %v238 = vmul.f32 %v227, %v234
    %v239 = vmul.f32 %v228, %v234
    %v240 = vld [vmem:[%s3] sm:$0xf]
    %v241 = vld [vmem:[%s5] sm:$0xf]
    %v242 = vunpack.c.l.bf16 %v241
    %244 = vset.pattern.permute.xlu0 0
    %245 = vperm.xlu0 %244, %v240
    %v246 = vpop.permute.xlu0 %245
    %v249 = vlaneseq
    %v250 = vshrl.u32 %v249, 7
    %v251 = vsub.s32 0, %v250
    %v252 = vrot.slane %v242, %v251
    %v253 = vlaneseq
    %v254 = vshrl.u32 %v253, 7
    %v255 = vsub.s32 2, %v254
    %v256 = vrot.slane %v242, %v255
    %v257 = vlaneseq
    %v258 = vshrl.u32 %v257, 7
    %v259 = vsub.s32 4, %v258
    %v260 = vrot.slane %v242, %v259
    %v261 = vlaneseq
    %v262 = vshrl.u32 %v261, 7
    %v263 = vsub.s32 6, %v262
    %v264 = vrot.slane %v242, %v263
    %v269 = vlaneseq
    %v270 = vshrl.u32 %v269, 7
    %v271 = vsub.s32 0, %v270
    %v272 = vrot.slane %v252, %v271
    %v273 = vlaneseq
    %v274 = vshrl.u32 %v273, 7
    %v275 = vsub.s32 0, %v274
    %v276 = vrot.slane %v256, %v275
    %v277 = vlaneseq
    %v278 = vshrl.u32 %v277, 7
    %v279 = vsub.s32 0, %v278
    %v280 = vrot.slane %v260, %v279
    %v281 = vlaneseq
    %v282 = vshrl.u32 %v281, 7
    %v283 = vsub.s32 0, %v282
    %v284 = vrot.slane %v264, %v283
    %v285 = vmul.f32 %v246, %v272
    %v286 = vmul.f32 %v246, %v276
    %v287 = vmul.f32 %v246, %v280
    %v288 = vmul.f32 %v246, %v284
    %289 = vrot.lane.b32.xlu0 %v225, 16
    %v290 = vpop.permute.xlu0 %289
    %291 = vrot.lane.b32.xlu0 %v226, 16
    %v292 = vpop.permute.xlu0 %291
    %293 = vrot.lane.b32.xlu0 %v227, 16
    %v294 = vpop.permute.xlu0 %293
    %295 = vrot.lane.b32.xlu0 %v228, 16
    %v296 = vpop.permute.xlu0 %295
    %v297 = vlaneseq
    %v298 = vand.u32 %v297, 127
    %vm299 = vcmp.lt.s32.totalorder %v298, 16
    %v300 = vsel %vm299, %v294, %v296
    %v301 = vsel %vm299, %v292, %v294
    %v302 = vsel %vm299, %v290, %v292
    %v303 = vsel %vm299, %v296, %v290
    %v304 = vmul.f32 %v303, %v285
    %v305 = vmul.f32 %v302, %v286
    %v306 = vmul.f32 %v301, %v287
    %v307 = vmul.f32 %v300, %v288
    %v308 = vadd.f32 %v236, %v304
    %v309 = vadd.f32 %v237, %v305
    %v310 = vadd.f32 %v238, %v306
    %v311 = vadd.f32 %v239, %v307
    %s312 = scalar_lea.vmem %s3, 8
    %v313 = vld [vmem:[%s312] sm:$0xf]
    %s314 = scalar_lea.vmem %s5, 8
    %v315 = vld [vmem:[%s314] sm:$0xf]
    %v316 = vunpack.c.l.bf16 %v315
    %318 = vset.pattern.permute.xlu0 0
    %319 = vperm.xlu0 %318, %v313
    %v320 = vpop.permute.xlu0 %319
    %v323 = vlaneseq
    %v324 = vshrl.u32 %v323, 7
    %v325 = vsub.s32 0, %v324
    %v326 = vrot.slane %v316, %v325
    %v327 = vlaneseq
    %v328 = vshrl.u32 %v327, 7
    %v329 = vsub.s32 2, %v328
    %v330 = vrot.slane %v316, %v329
    %v331 = vlaneseq
    %v332 = vshrl.u32 %v331, 7
    %v333 = vsub.s32 4, %v332
    %v334 = vrot.slane %v316, %v333
    %v335 = vlaneseq
    %v336 = vshrl.u32 %v335, 7
    %v337 = vsub.s32 6, %v336
    %v338 = vrot.slane %v316, %v337
    %v343 = vlaneseq
    %v344 = vshrl.u32 %v343, 7
    %v345 = vsub.s32 0, %v344
    %v346 = vrot.slane %v326, %v345
    %v347 = vlaneseq
    %v348 = vshrl.u32 %v347, 7
    %v349 = vsub.s32 0, %v348
    %v350 = vrot.slane %v330, %v349
    %v351 = vlaneseq
    %v352 = vshrl.u32 %v351, 7
    %v353 = vsub.s32 0, %v352
    %v354 = vrot.slane %v334, %v353
    %v355 = vlaneseq
    %v356 = vshrl.u32 %v355, 7
    %v357 = vsub.s32 0, %v356
    %v358 = vrot.slane %v338, %v357
    %v359 = vmul.f32 %v320, %v346
    %v360 = vmul.f32 %v320, %v350
    %v361 = vmul.f32 %v320, %v354
    %v362 = vmul.f32 %v320, %v358
    %363 = vrot.lane.b32.xlu0 %v225, 112
    %v364 = vpop.permute.xlu0 %363
    %365 = vrot.lane.b32.xlu0 %v226, 112
    %v366 = vpop.permute.xlu0 %365
    %367 = vrot.lane.b32.xlu0 %v227, 112
    %v368 = vpop.permute.xlu0 %367
    %369 = vrot.lane.b32.xlu0 %v228, 112
    %v370 = vpop.permute.xlu0 %369
    %vm371 = vcmp.lt.s32.totalorder %v298, 112
    %v372 = vsel %vm371, %v368, %v370
    %v373 = vsel %vm371, %v366, %v368
    %v374 = vsel %vm371, %v364, %v366
    %v375 = vsel %vm371, %v370, %v364
    %v376 = vmul.f32 %v374, %v359
    %v377 = vmul.f32 %v373, %v360
    %v378 = vmul.f32 %v372, %v361
    %v379 = vmul.f32 %v375, %v362
    %v380 = vadd.f32 %v308, %v376
    %v381 = vadd.f32 %v309, %v377
    %v382 = vadd.f32 %v310, %v378
    %v383 = vadd.f32 %v311, %v379
    %v384 = vld [vmem:[%s4] sm:$0xf]
    %386 = vset.pattern.permute.xlu0 0
    %387 = vperm.xlu0 %386, %v384
    %v388 = vpop.permute.xlu0 %387
    %v390 = vadd.f32 %v380, %v388
    %v391 = vadd.f32 %v381, %v388
    %v392 = vadd.f32 %v382, %v388
    %v393 = vadd.f32 %v383, %v388
    %v394 = vmax.f32 %v390, 0.0
    %v395 = vmax.f32 %v391, 0.0
    %v396 = vmax.f32 %v392, 0.0
    %v397 = vmax.f32 %v393, 0.0
    %v398 = vld [vmem:[%s13] sm:$0xf]
    %v399 = vld [vmem:[%s13 + $0x4] sm:$0xf]
    %v400 = vld [vmem:[%s13 + $0x8] sm:$0xf]
    %v401 = vld [vmem:[%s13 + $0xc] sm:$0xf]
    %v402 = vld [vmem:[%s13 + $0x10] sm:$0xf]
    %v403 = vld [vmem:[%s13 + $0x14] sm:$0xf]
    %v404 = vld [vmem:[%s13 + $0x18] sm:$0xf]
    %v405 = vld [vmem:[%s13 + $0x1c] sm:$0xf]
    %v406 = vld [vmem:[%s13 + $0x20] sm:$0xf]
    %v407 = vld [vmem:[%s13 + $0x24] sm:$0xf]
    %v408 = vld [vmem:[%s13 + $0x28] sm:$0xf]
    %v409 = vld [vmem:[%s13 + $0x2c] sm:$0xf]
    %v410 = vld [vmem:[%s13 + $0x30] sm:$0xf]
    %v411 = vld [vmem:[%s13 + $0x34] sm:$0xf]
    %v412 = vld [vmem:[%s13 + $0x38] sm:$0xf]
    %v413 = vld [vmem:[%s13 + $0x3c] sm:$0xf]
    %v414 = vld [vmem:[%s13 + $0x40] sm:$0xf]
    %v415 = vld [vmem:[%s13 + $0x44] sm:$0xf]
    %v416 = vld [vmem:[%s13 + $0x48] sm:$0xf]
    %v417 = vld [vmem:[%s13 + $0x4c] sm:$0xf]
    %v418 = vld [vmem:[%s13 + $0x50] sm:$0xf]
    %v419 = vld [vmem:[%s13 + $0x54] sm:$0xf]
    %v420 = vld [vmem:[%s13 + $0x58] sm:$0xf]
    %v421 = vld [vmem:[%s13 + $0x5c] sm:$0xf]
    %v422 = vld [vmem:[%s13 + $0x60] sm:$0xf]
    %v423 = vld [vmem:[%s13 + $0x64] sm:$0xf]
    %v424 = vld [vmem:[%s13 + $0x68] sm:$0xf]
    %v425 = vld [vmem:[%s13 + $0x6c] sm:$0xf]
    %v426 = vld [vmem:[%s13 + $0x70] sm:$0xf]
    %v427 = vld [vmem:[%s13 + $0x74] sm:$0xf]
    %v428 = vld [vmem:[%s13 + $0x78] sm:$0xf]
    %v429 = vld [vmem:[%s13 + $0x7c] sm:$0xf]
    %v430 = vld [vmem:[%s13 + $0x80] sm:$0xf]
    %v431 = vld [vmem:[%s13 + $0x84] sm:$0xf]
    %v432 = vld [vmem:[%s13 + $0x88] sm:$0xf]
    %v433 = vld [vmem:[%s13 + $0x8c] sm:$0xf]
    %v434 = vld [vmem:[%s13 + $0x90] sm:$0xf]
    %v435 = vld [vmem:[%s13 + $0x94] sm:$0xf]
    %v436 = vld [vmem:[%s13 + $0x98] sm:$0xf]
    %v437 = vld [vmem:[%s13 + $0x9c] sm:$0xf]
    %v438 = vld [vmem:[%s13 + $0xa0] sm:$0xf]
    %v439 = vld [vmem:[%s13 + $0xa4] sm:$0xf]
    %v440 = vld [vmem:[%s13 + $0xa8] sm:$0xf]
    %v441 = vld [vmem:[%s13 + $0xac] sm:$0xf]
    %v442 = vld [vmem:[%s13 + $0xb0] sm:$0xf]
    %v443 = vld [vmem:[%s13 + $0xb4] sm:$0xf]
    %v444 = vld [vmem:[%s13 + $0xb8] sm:$0xf]
    %v445 = vld [vmem:[%s13 + $0xbc] sm:$0xf]
    %v446 = vld [vmem:[%s13 + $0xc0] sm:$0xf]
    %v447 = vld [vmem:[%s13 + $0xc4] sm:$0xf]
    %v448 = vld [vmem:[%s13 + $0xc8] sm:$0xf]
    %v449 = vld [vmem:[%s13 + $0xcc] sm:$0xf]
    %v450 = vld [vmem:[%s13 + $0xd0] sm:$0xf]
    %v451 = vld [vmem:[%s13 + $0xd4] sm:$0xf]
    %v452 = vld [vmem:[%s13 + $0xd8] sm:$0xf]
    %v453 = vld [vmem:[%s13 + $0xdc] sm:$0xf]
    %v454 = vld [vmem:[%s13 + $0xe0] sm:$0xf]
    %v455 = vld [vmem:[%s13 + $0xe4] sm:$0xf]
    %v456 = vld [vmem:[%s13 + $0xe8] sm:$0xf]
    %v457 = vld [vmem:[%s13 + $0xec] sm:$0xf]
    %v458 = vld [vmem:[%s13 + $0xf0] sm:$0xf]
    %v459 = vld [vmem:[%s13 + $0xf4] sm:$0xf]
    %v460 = vld [vmem:[%s13 + $0xf8] sm:$0xf]
    %v461 = vld [vmem:[%s13 + $0xfc] sm:$0xf]
    %v462 = vunpack.c.l.bf16 %v398
    %v463 = vunpack.c.l.bf16 %v399
    %v464 = vunpack.c.l.bf16 %v400
    %v465 = vunpack.c.l.bf16 %v401
    %v466 = vunpack.c.l.bf16 %v402
    %v467 = vunpack.c.l.bf16 %v403
    %v468 = vunpack.c.l.bf16 %v404
    %v469 = vunpack.c.l.bf16 %v405
    %v470 = vunpack.c.l.bf16 %v406
    %v471 = vunpack.c.l.bf16 %v407
    %v472 = vunpack.c.l.bf16 %v408
    %v473 = vunpack.c.l.bf16 %v409
    %v474 = vunpack.c.l.bf16 %v410
    %v475 = vunpack.c.l.bf16 %v411
    %v476 = vunpack.c.l.bf16 %v412
    %v477 = vunpack.c.l.bf16 %v413
    %v478 = vunpack.c.l.bf16 %v414
    %v479 = vunpack.c.l.bf16 %v415
    %v480 = vunpack.c.l.bf16 %v416
    %v481 = vunpack.c.l.bf16 %v417
    %v482 = vunpack.c.l.bf16 %v418
    %v483 = vunpack.c.l.bf16 %v419
    %v484 = vunpack.c.l.bf16 %v420
    %v485 = vunpack.c.l.bf16 %v421
    %v486 = vunpack.c.l.bf16 %v422
    %v487 = vunpack.c.l.bf16 %v423
    %v488 = vunpack.c.l.bf16 %v424
    %v489 = vunpack.c.l.bf16 %v425
    %v490 = vunpack.c.l.bf16 %v426
    %v491 = vunpack.c.l.bf16 %v427
    %v492 = vunpack.c.l.bf16 %v428
    %v493 = vunpack.c.l.bf16 %v429
    %v494 = vunpack.c.l.bf16 %v430
    %v495 = vunpack.c.l.bf16 %v431
    %v496 = vunpack.c.l.bf16 %v432
    %v497 = vunpack.c.l.bf16 %v433
    %v498 = vunpack.c.l.bf16 %v434
    %v499 = vunpack.c.l.bf16 %v435
    %v500 = vunpack.c.l.bf16 %v436
    %v501 = vunpack.c.l.bf16 %v437
    %v502 = vunpack.c.l.bf16 %v438
    %v503 = vunpack.c.l.bf16 %v439
    %v504 = vunpack.c.l.bf16 %v440
    %v505 = vunpack.c.l.bf16 %v441
    %v506 = vunpack.c.l.bf16 %v442
    %v507 = vunpack.c.l.bf16 %v443
    %v508 = vunpack.c.l.bf16 %v444
    %v509 = vunpack.c.l.bf16 %v445
    %v510 = vunpack.c.l.bf16 %v446
    %v511 = vunpack.c.l.bf16 %v447
    %v512 = vunpack.c.l.bf16 %v448
    %v513 = vunpack.c.l.bf16 %v449
    %v514 = vunpack.c.l.bf16 %v450
    %v515 = vunpack.c.l.bf16 %v451
    %v516 = vunpack.c.l.bf16 %v452
    %v517 = vunpack.c.l.bf16 %v453
    %v518 = vunpack.c.l.bf16 %v454
    %v519 = vunpack.c.l.bf16 %v455
    %v520 = vunpack.c.l.bf16 %v456
    %v521 = vunpack.c.l.bf16 %v457
    %v522 = vunpack.c.l.bf16 %v458
    %v523 = vunpack.c.l.bf16 %v459
    %v524 = vunpack.c.l.bf16 %v460
    %v525 = vunpack.c.l.bf16 %v461
    %526 = vmatprep.subr.mxu0 0.0
    %527 = vmatpush1.msra.mxu0 %v462
    %528 = vmatprep.subr.mxu0 0.0
    %529 = vmatpush1.msra.mxu0 %v463
    %530 = vmatprep.subr.mxu0 0.0
    %531 = vmatpush1.msra.mxu0 %v464
    %532 = vmatprep.subr.mxu0 0.0
    %533 = vmatpush1.msra.mxu0 %v465
    %534 = vmatprep.subr.mxu0 0.0
    %535 = vmatpush1.msra.mxu0 %v466
    %536 = vmatprep.subr.mxu0 0.0
    %537 = vmatpush1.msra.mxu0 %v467
    %538 = vmatprep.subr.mxu0 0.0
    %539 = vmatpush1.msra.mxu0 %v468
    %540 = vmatprep.subr.mxu0 0.0
    %541 = vmatpush1.msra.mxu0 %v469
    %542 = vmatprep.subr.mxu0 0.0
    %543 = vmatpush1.msra.mxu0 %v470
    %544 = vmatprep.subr.mxu0 0.0
    %545 = vmatpush1.msra.mxu0 %v471
    %546 = vmatprep.subr.mxu0 0.0
    %547 = vmatpush1.msra.mxu0 %v472
    %548 = vmatprep.subr.mxu0 0.0
    %549 = vmatpush1.msra.mxu0 %v473
    %550 = vmatprep.subr.mxu0 0.0
    %551 = vmatpush1.msra.mxu0 %v474
    %552 = vmatprep.subr.mxu0 0.0
    %553 = vmatpush1.msra.mxu0 %v475
    %554 = vmatprep.subr.mxu0 0.0
    %555 = vmatpush1.msra.mxu0 %v476
    %556 = vmatprep.subr.mxu0 0.0
    %557 = vmatpush1.msra.mxu0 %v477
    %558 = vmatprep.subr.mxu0 0.0
    %559 = vmatpush1.msra.mxu0 %v478
    %560 = vmatprep.subr.mxu0 0.0
    %561 = vmatpush1.msra.mxu0 %v479
    %562 = vmatprep.subr.mxu0 0.0
    %563 = vmatpush1.msra.mxu0 %v480
    %564 = vmatprep.subr.mxu0 0.0
    %565 = vmatpush1.msra.mxu0 %v481
    %566 = vmatprep.subr.mxu0 0.0
    %567 = vmatpush1.msra.mxu0 %v482
    %568 = vmatprep.subr.mxu0 0.0
    %569 = vmatpush1.msra.mxu0 %v483
    %570 = vmatprep.subr.mxu0 0.0
    %571 = vmatpush1.msra.mxu0 %v484
    %572 = vmatprep.subr.mxu0 0.0
    %573 = vmatpush1.msra.mxu0 %v485
    %574 = vmatprep.subr.mxu0 0.0
    %575 = vmatpush1.msra.mxu0 %v486
    %576 = vmatprep.subr.mxu0 0.0
    %577 = vmatpush1.msra.mxu0 %v487
    %578 = vmatprep.subr.mxu0 0.0
    %579 = vmatpush1.msra.mxu0 %v488
    %580 = vmatprep.subr.mxu0 0.0
    %581 = vmatpush1.msra.mxu0 %v489
    %582 = vmatprep.subr.mxu0 0.0
    %583 = vmatpush1.msra.mxu0 %v490
    %584 = vmatprep.subr.mxu0 0.0
    %585 = vmatpush1.msra.mxu0 %v491
    %586 = vmatprep.subr.mxu0 0.0
    %587 = vmatpush1.msra.mxu0 %v492
    %588 = vmatprep.subr.mxu0 0.0
    %589 = vmatpush1.msra.mxu0 %v493
    %590 = vmatprep.mubr.f32.mxu0 %v395
    %591 = vmatmul.mubr.f32.gmra.mrb[0].mxu0 %v394
    %v592 = vpop.f32.mrb[0].mxu0
    %v593 = vadd.f32 0.0, %v592
    %v594 = vpop.f32.mrb[0].mxu0
    %595 = vdwg.mxu0
    %596 = vmatprep.subr.mxu0 0.0
    %597 = vmatpush1.msra.mxu0 %v494
    %598 = vmatprep.subr.mxu0 0.0
    %599 = vmatpush1.msra.mxu0 %v495
    %600 = vmatprep.subr.mxu0 0.0
    %601 = vmatpush1.msra.mxu0 %v496
    %602 = vmatprep.subr.mxu0 0.0
    %603 = vmatpush1.msra.mxu0 %v497
    %604 = vmatprep.subr.mxu0 0.0
    %605 = vmatpush1.msra.mxu0 %v498
    %606 = vmatprep.subr.mxu0 0.0
    %607 = vmatpush1.msra.mxu0 %v499
    %608 = vmatprep.subr.mxu0 0.0
    %609 = vmatpush1.msra.mxu0 %v500
    %610 = vmatprep.subr.mxu0 0.0
    %611 = vmatpush1.msra.mxu0 %v501
    %612 = vmatprep.subr.mxu0 0.0
    %613 = vmatpush1.msra.mxu0 %v502
    %614 = vmatprep.subr.mxu0 0.0
    %615 = vmatpush1.msra.mxu0 %v503
    %616 = vmatprep.subr.mxu0 0.0
    %617 = vmatpush1.msra.mxu0 %v504
    %618 = vmatprep.subr.mxu0 0.0
    %619 = vmatpush1.msra.mxu0 %v505
    %620 = vmatprep.subr.mxu0 0.0
    %621 = vmatpush1.msra.mxu0 %v506
    %622 = vmatprep.subr.mxu0 0.0
    %623 = vmatpush1.msra.mxu0 %v507
    %624 = vmatprep.subr.mxu0 0.0
    %625 = vmatpush1.msra.mxu0 %v508
    %626 = vmatprep.subr.mxu0 0.0
    %627 = vmatpush1.msra.mxu0 %v509
    %628 = vmatprep.subr.mxu0 0.0
    %629 = vmatpush1.msra.mxu0 %v510
    %630 = vmatprep.subr.mxu0 0.0
    %631 = vmatpush1.msra.mxu0 %v511
    %632 = vmatprep.subr.mxu0 0.0
    %633 = vmatpush1.msra.mxu0 %v512
    %634 = vmatprep.subr.mxu0 0.0
    %635 = vmatpush1.msra.mxu0 %v513
    %636 = vmatprep.subr.mxu0 0.0
    %637 = vmatpush1.msra.mxu0 %v514
    %638 = vmatprep.subr.mxu0 0.0
    %639 = vmatpush1.msra.mxu0 %v515
    %640 = vmatprep.subr.mxu0 0.0
    %641 = vmatpush1.msra.mxu0 %v516
    %642 = vmatprep.subr.mxu0 0.0
    %643 = vmatpush1.msra.mxu0 %v517
    %644 = vmatprep.subr.mxu0 0.0
    %645 = vmatpush1.msra.mxu0 %v518
    %646 = vmatprep.subr.mxu0 0.0
    %647 = vmatpush1.msra.mxu0 %v519
    %648 = vmatprep.subr.mxu0 0.0
    %649 = vmatpush1.msra.mxu0 %v520
    %650 = vmatprep.subr.mxu0 0.0
    %651 = vmatpush1.msra.mxu0 %v521
    %652 = vmatprep.subr.mxu0 0.0
    %653 = vmatpush1.msra.mxu0 %v522
    %654 = vmatprep.subr.mxu0 0.0
    %655 = vmatpush1.msra.mxu0 %v523
    %656 = vmatprep.subr.mxu0 0.0
    %657 = vmatpush1.msra.mxu0 %v524
    %658 = vmatprep.subr.mxu0 0.0
    %659 = vmatpush1.msra.mxu0 %v525
    %660 = vmatprep.mubr.f32.mxu0 %v397
    %661 = vmatmul.mubr.f32.gmra.mrb[0].mxu0 %v396
    %v662 = vpop.f32.mrb[0].mxu0
    %v663 = vadd.f32 %v593, %v662
    %v664 = vpop.f32.mrb[0].mxu0
    %665 = vdwg.mxu0
    %v666 = vld [vmem:[%s6] sm:$0xf]
    %v667 = vld [vmem:[%s7] sm:$0xf]
    %669 = vset.pattern.permute.xlu0 0
    %670 = vperm.xlu0 %669, %v667
    %v671 = vpop.permute.xlu0 %670
    %v674 = vsel %vm70, %v666, 0
    %v677 = vsel %vm74, %v663, 0
    %679 = vmatprep.subr.mxu0 0.0
    %680 = vmatpush1.msra.mxu0 %v677
    %681 = vmatprep.subr.mxu0 0.0
    %682 = vmatpush1.msra.mxu0 0.0
    %683 = vmatprep.subr.mxu0 0.0
    %684 = vmatpush1.msra.mxu0 0.0
    %685 = vmatprep.subr.mxu0 0.0
    %686 = vmatpush1.msra.mxu0 0.0
    %687 = vmatprep.subr.mxu0 0.0
    %688 = vmatpush1.msra.mxu0 0.0
    %689 = vmatprep.subr.mxu0 0.0
    %690 = vmatpush1.msra.mxu0 0.0
    %691 = vmatprep.subr.mxu0 0.0
    %692 = vmatpush1.msra.mxu0 0.0
    %693 = vmatprep.subr.mxu0 0.0
    %694 = vmatpush1.msra.mxu0 0.0
    %695 = vmatprep.subr.mxu0 0.0
    %696 = vmatpush1.msra.mxu0 0.0
    %697 = vmatprep.subr.mxu0 0.0
    %698 = vmatpush1.msra.mxu0 0.0
    %699 = vmatprep.subr.mxu0 0.0
    %700 = vmatpush1.msra.mxu0 0.0
    %701 = vmatprep.subr.mxu0 0.0
    %702 = vmatpush1.msra.mxu0 0.0
    %703 = vmatprep.subr.mxu0 0.0
    %704 = vmatpush1.msra.mxu0 0.0
    %705 = vmatprep.subr.mxu0 0.0
    %706 = vmatpush1.msra.mxu0 0.0
    %707 = vmatprep.subr.mxu0 0.0
    %708 = vmatpush1.msra.mxu0 0.0
    %709 = vmatprep.subr.mxu0 0.0
    %710 = vmatpush1.msra.mxu0 0.0
    %711 = vmatprep.subr.mxu0 0.0
    %712 = vmatpush1.msra.mxu0 0.0
    %713 = vmatprep.subr.mxu0 0.0
    %714 = vmatpush1.msra.mxu0 0.0
    %715 = vmatprep.subr.mxu0 0.0
    %716 = vmatpush1.msra.mxu0 0.0
    %717 = vmatprep.subr.mxu0 0.0
    %718 = vmatpush1.msra.mxu0 0.0
    %719 = vmatprep.subr.mxu0 0.0
    %720 = vmatpush1.msra.mxu0 0.0
    %721 = vmatprep.subr.mxu0 0.0
    %722 = vmatpush1.msra.mxu0 0.0
    %723 = vmatprep.subr.mxu0 0.0
    %724 = vmatpush1.msra.mxu0 0.0
    %725 = vmatprep.subr.mxu0 0.0
    %726 = vmatpush1.msra.mxu0 0.0
    %727 = vmatprep.subr.mxu0 0.0
    %728 = vmatpush1.msra.mxu0 0.0
    %729 = vmatprep.subr.mxu0 0.0
    %730 = vmatpush1.msra.mxu0 0.0
    %731 = vmatprep.subr.mxu0 0.0
    %732 = vmatpush1.msra.mxu0 0.0
    %733 = vmatprep.subr.mxu0 0.0
    %734 = vmatpush1.msra.mxu0 0.0
    %735 = vmatprep.subr.mxu0 0.0
    %736 = vmatpush1.msra.mxu0 0.0
    %737 = vmatprep.subr.mxu0 0.0
    %738 = vmatpush1.msra.mxu0 0.0
    %739 = vmatprep.subr.mxu0 0.0
    %740 = vmatpush1.msra.mxu0 0.0
    %741 = vmatprep.subr.mxu0 0.0
    %742 = vmatpush1.msra.mxu0 0.0
    %743 = vmatprep.mubr.f32.mxu0 0.0
    %744 = vmatmul.mubr.f32.gmra.mrb[0].mxu0 %v674
    %v745 = vpop.f32.mrb[0].mxu0
    %v746 = vadd.f32 %v671, %v745
    %v747 = vpop.f32.mrb[0].mxu0
    %748 = vdwg.mxu0
    %v749 = vmax.f32 %v746, 0.0
    %v750 = vld [vmem:[%s14] sm:$0xff]
    %v751 = vld [vmem:[%s14 + $0x8] sm:$0xff]
    %v752 = vld [vmem:[%s14 + $0x10] sm:$0xff]
    %v753 = vld [vmem:[%s14 + $0x18] sm:$0xff]
    %v754 = vld [vmem:[%s14 + $0x20] sm:$0xff]
    %v755 = vld [vmem:[%s14 + $0x28] sm:$0xff]
    %v756 = vld [vmem:[%s14 + $0x30] sm:$0xff]
    %v757 = vld [vmem:[%s14 + $0x38] sm:$0xff]
    %v758 = vunpack.c.l.bf16 %v750
    %v759 = vunpack.c.h.bf16 %v750
    %v760 = vunpack.c.l.bf16 %v751
    %v761 = vunpack.c.h.bf16 %v751
    %v762 = vunpack.c.l.bf16 %v752
    %v763 = vunpack.c.h.bf16 %v752
    %v764 = vunpack.c.l.bf16 %v753
    %v765 = vunpack.c.h.bf16 %v753
    %v766 = vunpack.c.l.bf16 %v754
    %v767 = vunpack.c.h.bf16 %v754
    %v768 = vunpack.c.l.bf16 %v755
    %v769 = vunpack.c.h.bf16 %v755
    %v770 = vunpack.c.l.bf16 %v756
    %v771 = vunpack.c.h.bf16 %v756
    %v772 = vunpack.c.l.bf16 %v757
    %v773 = vunpack.c.h.bf16 %v757
    %vm774 = vcmask 261120
    %v776 = vsel %vm774, %v749, 0
    %778 = vmatprep.subr.mxu0 %v759
    %779 = vmatpush1.msra.mxu0 %v758
    %780 = vmatprep.subr.mxu0 %v763
    %781 = vmatpush1.msra.mxu0 %v762
    %782 = vmatprep.subr.mxu0 %v767
    %783 = vmatpush1.msra.mxu0 %v766
    %784 = vmatprep.subr.mxu0 %v771
    %785 = vmatpush1.msra.mxu0 %v770
    %786 = vmatprep.subr.mxu0 0.0
    %787 = vmatpush1.msra.mxu0 0.0
    %788 = vmatprep.subr.mxu0 0.0
    %789 = vmatpush1.msra.mxu0 0.0
    %790 = vmatprep.subr.mxu0 0.0
    %791 = vmatpush1.msra.mxu0 0.0
    %792 = vmatprep.subr.mxu0 0.0
    %793 = vmatpush1.msra.mxu0 0.0
    %794 = vmatprep.subr.mxu0 0.0
    %795 = vmatpush1.msra.mxu0 0.0
    %796 = vmatprep.subr.mxu0 0.0
    %797 = vmatpush1.msra.mxu0 0.0
    %798 = vmatprep.subr.mxu0 0.0
    %799 = vmatpush1.msra.mxu0 0.0
    %800 = vmatprep.subr.mxu0 0.0
    %801 = vmatpush1.msra.mxu0 0.0
    %802 = vmatprep.subr.mxu0 0.0
    %803 = vmatpush1.msra.mxu0 0.0
    %804 = vmatprep.subr.mxu0 0.0
    %805 = vmatpush1.msra.mxu0 0.0
    %806 = vmatprep.subr.mxu0 0.0
    %807 = vmatpush1.msra.mxu0 0.0
    %808 = vmatprep.subr.mxu0 0.0
    %809 = vmatpush1.msra.mxu0 0.0
    %810 = vmatprep.subr.mxu0 0.0
    %811 = vmatpush1.msra.mxu0 0.0
    %812 = vmatprep.subr.mxu0 0.0
    %813 = vmatpush1.msra.mxu0 0.0
    %814 = vmatprep.subr.mxu0 0.0
    %815 = vmatpush1.msra.mxu0 0.0
    %816 = vmatprep.subr.mxu0 0.0
    %817 = vmatpush1.msra.mxu0 0.0
    %818 = vmatprep.subr.mxu0 0.0
    %819 = vmatpush1.msra.mxu0 0.0
    %820 = vmatprep.subr.mxu0 0.0
    %821 = vmatpush1.msra.mxu0 0.0
    %822 = vmatprep.subr.mxu0 0.0
    %823 = vmatpush1.msra.mxu0 0.0
    %824 = vmatprep.subr.mxu0 0.0
    %825 = vmatpush1.msra.mxu0 0.0
    %826 = vmatprep.subr.mxu0 0.0
    %827 = vmatpush1.msra.mxu0 0.0
    %828 = vmatprep.subr.mxu0 0.0
    %829 = vmatpush1.msra.mxu0 0.0
    %830 = vmatprep.subr.mxu0 0.0
    %831 = vmatpush1.msra.mxu0 0.0
    %832 = vmatprep.subr.mxu0 0.0
    %833 = vmatpush1.msra.mxu0 0.0
    %834 = vmatprep.subr.mxu0 0.0
    %835 = vmatpush1.msra.mxu0 0.0
    %836 = vmatprep.subr.mxu0 0.0
    %837 = vmatpush1.msra.mxu0 0.0
    %838 = vmatprep.subr.mxu0 0.0
    %839 = vmatpush1.msra.mxu0 0.0
    %840 = vmatprep.subr.mxu0 0.0
    %841 = vmatpush1.msra.mxu0 0.0
    %842 = vmatprep.mubr.f32.mxu0 0.0
    %843 = vmatmul.mubr.f32.gmra.mrb[0].mxu0 %v776
    %v844 = vpop.f32.mrb[0].mxu0
    %v845 = vadd.f32 0.0, %v844
    %v846 = vpop.f32.mrb[0].mxu0
    %v847 = vadd.f32 0.0, %v846
    %848 = vdwg.mxu0
    %849 = vmatprep.subr.mxu0 %v761
    %850 = vmatpush1.msra.mxu0 %v760
    %851 = vmatprep.subr.mxu0 %v765
    %852 = vmatpush1.msra.mxu0 %v764
    %853 = vmatprep.subr.mxu0 %v769
    %854 = vmatpush1.msra.mxu0 %v768
    %855 = vmatprep.subr.mxu0 %v773
    %856 = vmatpush1.msra.mxu0 %v772
    %857 = vmatprep.subr.mxu0 0.0
    %858 = vmatpush1.msra.mxu0 0.0
    %859 = vmatprep.subr.mxu0 0.0
    %860 = vmatpush1.msra.mxu0 0.0
    %861 = vmatprep.subr.mxu0 0.0
    %862 = vmatpush1.msra.mxu0 0.0
    %863 = vmatprep.subr.mxu0 0.0
    %864 = vmatpush1.msra.mxu0 0.0
    %865 = vmatprep.subr.mxu0 0.0
    %866 = vmatpush1.msra.mxu0 0.0
    %867 = vmatprep.subr.mxu0 0.0
    %868 = vmatpush1.msra.mxu0 0.0
    %869 = vmatprep.subr.mxu0 0.0
    %870 = vmatpush1.msra.mxu0 0.0
    %871 = vmatprep.subr.mxu0 0.0
    %872 = vmatpush1.msra.mxu0 0.0
    %873 = vmatprep.subr.mxu0 0.0
    %874 = vmatpush1.msra.mxu0 0.0
    %875 = vmatprep.subr.mxu0 0.0
    %876 = vmatpush1.msra.mxu0 0.0
    %877 = vmatprep.subr.mxu0 0.0
    %878 = vmatpush1.msra.mxu0 0.0
    %879 = vmatprep.subr.mxu0 0.0
    %880 = vmatpush1.msra.mxu0 0.0
    %881 = vmatprep.subr.mxu0 0.0
    %882 = vmatpush1.msra.mxu0 0.0
    %883 = vmatprep.subr.mxu0 0.0
    %884 = vmatpush1.msra.mxu0 0.0
    %885 = vmatprep.subr.mxu0 0.0
    %886 = vmatpush1.msra.mxu0 0.0
    %887 = vmatprep.subr.mxu0 0.0
    %888 = vmatpush1.msra.mxu0 0.0
    %889 = vmatprep.subr.mxu0 0.0
    %890 = vmatpush1.msra.mxu0 0.0
    %891 = vmatprep.subr.mxu0 0.0
    %892 = vmatpush1.msra.mxu0 0.0
    %893 = vmatprep.subr.mxu0 0.0
    %894 = vmatpush1.msra.mxu0 0.0
    %895 = vmatprep.subr.mxu0 0.0
    %896 = vmatpush1.msra.mxu0 0.0
    %897 = vmatprep.subr.mxu0 0.0
    %898 = vmatpush1.msra.mxu0 0.0
    %899 = vmatprep.subr.mxu0 0.0
    %900 = vmatpush1.msra.mxu0 0.0
    %901 = vmatprep.subr.mxu0 0.0
    %902 = vmatpush1.msra.mxu0 0.0
    %903 = vmatprep.subr.mxu0 0.0
    %904 = vmatpush1.msra.mxu0 0.0
    %905 = vmatprep.subr.mxu0 0.0
    %906 = vmatpush1.msra.mxu0 0.0
    %907 = vmatprep.subr.mxu0 0.0
    %908 = vmatpush1.msra.mxu0 0.0
    %909 = vmatprep.subr.mxu0 0.0
    %910 = vmatpush1.msra.mxu0 0.0
    %911 = vmatprep.subr.mxu0 0.0
    %912 = vmatpush1.msra.mxu0 0.0
    %913 = vmatprep.mubr.f32.mxu0 0.0
    %914 = vmatmul.mubr.f32.gmra.mrb[0].mxu0 %v776
    %v915 = vpop.f32.mrb[0].mxu0
    %v916 = vadd.f32 0.0, %v915
    %v917 = vpop.f32.mrb[0].mxu0
    %v918 = vadd.f32 0.0, %v917
    %919 = vdwg.mxu0
    %s920 = scalar_lea.vmem %s8, 4
    %v921 = vld [vmem:[%s920] sm:$0xf]
    %923 = vset.pattern.permute.xlu0 0
    %924 = vperm.xlu0 %923, %v921
    %v925 = vpop.permute.xlu0 %924
    %v926 = vrot.slane %v925, 4
    %v928 = vmul.f32 %v225, %v926
    %v929 = vmul.f32 %v226, %v926
    %v930 = vmul.f32 %v227, %v926
    %v931 = vmul.f32 %v228, %v926
    %v932 = vld [vmem:[%s8] sm:$0xf]
    %v933 = vld [vmem:[%s10] sm:$0xf]
    %v934 = vunpack.c.l.bf16 %v933
    %936 = vset.pattern.permute.xlu0 0
    %937 = vperm.xlu0 %936, %v932
    %v938 = vpop.permute.xlu0 %937
    %v941 = vlaneseq
    %v942 = vshrl.u32 %v941, 7
    %v943 = vsub.s32 0, %v942
    %v944 = vrot.slane %v934, %v943
    %v945 = vlaneseq
    %v946 = vshrl.u32 %v945, 7
    %v947 = vsub.s32 2, %v946
    %v948 = vrot.slane %v934, %v947
    %v949 = vlaneseq
    %v950 = vshrl.u32 %v949, 7
    %v951 = vsub.s32 4, %v950
    %v952 = vrot.slane %v934, %v951
    %v953 = vlaneseq
    %v954 = vshrl.u32 %v953, 7
    %v955 = vsub.s32 6, %v954
    %v956 = vrot.slane %v934, %v955
    %v961 = vlaneseq
    %v962 = vshrl.u32 %v961, 7
    %v963 = vsub.s32 0, %v962
    %v964 = vrot.slane %v944, %v963
    %v965 = vlaneseq
    %v966 = vshrl.u32 %v965, 7
    %v967 = vsub.s32 0, %v966
    %v968 = vrot.slane %v948, %v967
    %v969 = vlaneseq
    %v970 = vshrl.u32 %v969, 7
    %v971 = vsub.s32 0, %v970
    %v972 = vrot.slane %v952, %v971
    %v973 = vlaneseq
    %v974 = vshrl.u32 %v973, 7
    %v975 = vsub.s32 0, %v974
    %v976 = vrot.slane %v956, %v975
    %v977 = vmul.f32 %v938, %v964
    %v978 = vmul.f32 %v938, %v968
    %v979 = vmul.f32 %v938, %v972
    %v980 = vmul.f32 %v938, %v976
    %v985 = vrot.slane %v225, 4
    %v986 = vrot.slane %v226, 4
    %v987 = vrot.slane %v227, 4
    %v988 = vrot.slane %v228, 4
    %993 = vrot.lane.b32.xlu0 %v985, 1
    %v994 = vpop.permute.xlu0 %993
    %995 = vrot.lane.b32.xlu0 %v986, 1
    %v996 = vpop.permute.xlu0 %995
    %997 = vrot.lane.b32.xlu0 %v987, 1
    %v998 = vpop.permute.xlu0 %997
    %999 = vrot.lane.b32.xlu0 %v988, 1
    %v1000 = vpop.permute.xlu0 %999
    %vm1001 = vcmp.lt.s32.totalorder %v298, 1
    %v1002 = vsel %vm1001, %v998, %v1000
    %v1003 = vsel %vm1001, %v996, %v998
    %v1004 = vsel %vm1001, %v994, %v996
    %v1005 = vsel %vm1001, %v1000, %v994
    %v1006 = vmul.f32 %v1005, %v977
    %v1007 = vmul.f32 %v1004, %v978
    %v1008 = vmul.f32 %v1003, %v979
    %v1009 = vmul.f32 %v1002, %v980
    %v1014 = vrot.slane %v1006, 4
    %v1015 = vrot.slane %v1007, 4
    %v1016 = vrot.slane %v1008, 4
    %v1017 = vrot.slane %v1009, 4
    %v1022 = vadd.f32 %v928, %v1014
    %v1023 = vadd.f32 %v929, %v1015
    %v1024 = vadd.f32 %v930, %v1016
    %v1025 = vadd.f32 %v931, %v1017
    %s1026 = scalar_lea.vmem %s8, 8
    %v1027 = vld [vmem:[%s1026] sm:$0xf]
    %s1028 = scalar_lea.vmem %s10, 8
    %v1029 = vld [vmem:[%s1028] sm:$0xf]
    %v1030 = vunpack.c.l.bf16 %v1029
    %1032 = vset.pattern.permute.xlu0 0
    %1033 = vperm.xlu0 %1032, %v1027
    %v1034 = vpop.permute.xlu0 %1033
    %v1037 = vlaneseq
    %v1038 = vshrl.u32 %v1037, 7
    %v1039 = vsub.s32 0, %v1038
    %v1040 = vrot.slane %v1030, %v1039
    %v1041 = vlaneseq
    %v1042 = vshrl.u32 %v1041, 7
    %v1043 = vsub.s32 2, %v1042
    %v1044 = vrot.slane %v1030, %v1043
    %v1045 = vlaneseq
    %v1046 = vshrl.u32 %v1045, 7
    %v1047 = vsub.s32 4, %v1046
    %v1048 = vrot.slane %v1030, %v1047
    %v1049 = vlaneseq
    %v1050 = vshrl.u32 %v1049, 7
    %v1051 = vsub.s32 6, %v1050
    %v1052 = vrot.slane %v1030, %v1051
    %v1057 = vlaneseq
    %v1058 = vshrl.u32 %v1057, 7
    %v1059 = vsub.s32 0, %v1058
    %v1060 = vrot.slane %v1040, %v1059
    %v1061 = vlaneseq
    %v1062 = vshrl.u32 %v1061, 7
    %v1063 = vsub.s32 0, %v1062
    %v1064 = vrot.slane %v1044, %v1063
    %v1065 = vlaneseq
    %v1066 = vshrl.u32 %v1065, 7
    %v1067 = vsub.s32 0, %v1066
    %v1068 = vrot.slane %v1048, %v1067
    %v1069 = vlaneseq
    %v1070 = vshrl.u32 %v1069, 7
    %v1071 = vsub.s32 0, %v1070
    %v1072 = vrot.slane %v1052, %v1071
    %v1073 = vmul.f32 %v1034, %v1060
    %v1074 = vmul.f32 %v1034, %v1064
    %v1075 = vmul.f32 %v1034, %v1068
    %v1076 = vmul.f32 %v1034, %v1072
    %1077 = vrot.lane.b32.xlu0 %v985, 127
    %v1078 = vpop.permute.xlu0 %1077
    %1079 = vrot.lane.b32.xlu0 %v986, 127
    %v1080 = vpop.permute.xlu0 %1079
    %1081 = vrot.lane.b32.xlu0 %v987, 127
    %v1082 = vpop.permute.xlu0 %1081
    %1083 = vrot.lane.b32.xlu0 %v988, 127
    %v1084 = vpop.permute.xlu0 %1083
    %vm1085 = vcmp.lt.s32.totalorder %v298, 127
    %v1086 = vsel %vm1085, %v1082, %v1084
    %v1087 = vsel %vm1085, %v1080, %v1082
    %v1088 = vsel %vm1085, %v1078, %v1080
    %v1089 = vsel %vm1085, %v1084, %v1078
    %v1090 = vmul.f32 %v1088, %v1073
    %v1091 = vmul.f32 %v1087, %v1074
    %v1092 = vmul.f32 %v1086, %v1075
    %v1093 = vmul.f32 %v1089, %v1076
    %v1098 = vrot.slane %v1090, 4
    %v1099 = vrot.slane %v1091, 4
    %v1100 = vrot.slane %v1092, 4
    %v1101 = vrot.slane %v1093, 4
    %v1106 = vadd.f32 %v1022, %v1098
    %v1107 = vadd.f32 %v1023, %v1099
    %v1108 = vadd.f32 %v1024, %v1100
    %v1109 = vadd.f32 %v1025, %v1101
    %v1110 = vld [vmem:[%s9] sm:$0xf]
    %1112 = vset.pattern.permute.xlu0 0
    %1113 = vperm.xlu0 %1112, %v1110
    %v1114 = vpop.permute.xlu0 %1113
    %v1115 = vrot.slane %v1114, 4
    %v1117 = vadd.f32 %v1106, %v1115
    %v1118 = vadd.f32 %v1107, %v1115
    %v1119 = vadd.f32 %v1108, %v1115
    %v1120 = vadd.f32 %v1109, %v1115
    %v1121 = vmax.f32 %v1117, 0.0
    %v1122 = vmax.f32 %v1118, 0.0
    %v1123 = vmax.f32 %v1119, 0.0
    %v1124 = vmax.f32 %v1120, 0.0
    %v1125 = vld [vmem:[%s15] sm:$0xf]
    %v1126 = vld [vmem:[%s15 + $0x4] sm:$0xf]
    %v1127 = vld [vmem:[%s15 + $0x8] sm:$0xf]
    %v1128 = vld [vmem:[%s15 + $0xc] sm:$0xf]
    %v1129 = vld [vmem:[%s15 + $0x10] sm:$0xf]
    %v1130 = vld [vmem:[%s15 + $0x14] sm:$0xf]
    %v1131 = vld [vmem:[%s15 + $0x18] sm:$0xf]
    %v1132 = vld [vmem:[%s15 + $0x1c] sm:$0xf]
    %v1133 = vld [vmem:[%s15 + $0x20] sm:$0xf]
    %v1134 = vld [vmem:[%s15 + $0x24] sm:$0xf]
    %v1135 = vld [vmem:[%s15 + $0x28] sm:$0xf]
    %v1136 = vld [vmem:[%s15 + $0x2c] sm:$0xf]
    %v1137 = vld [vmem:[%s15 + $0x30] sm:$0xf]
    %v1138 = vld [vmem:[%s15 + $0x34] sm:$0xf]
    %v1139 = vld [vmem:[%s15 + $0x38] sm:$0xf]
    %v1140 = vld [vmem:[%s15 + $0x3c] sm:$0xf]
    %v1141 = vld [vmem:[%s15 + $0x40] sm:$0xf]
    %v1142 = vld [vmem:[%s15 + $0x44] sm:$0xf]
    %v1143 = vld [vmem:[%s15 + $0x48] sm:$0xf]
    %v1144 = vld [vmem:[%s15 + $0x4c] sm:$0xf]
    %v1145 = vld [vmem:[%s15 + $0x50] sm:$0xf]
    %v1146 = vld [vmem:[%s15 + $0x54] sm:$0xf]
    %v1147 = vld [vmem:[%s15 + $0x58] sm:$0xf]
    %v1148 = vld [vmem:[%s15 + $0x5c] sm:$0xf]
    %v1149 = vld [vmem:[%s15 + $0x60] sm:$0xf]
    %v1150 = vld [vmem:[%s15 + $0x64] sm:$0xf]
    %v1151 = vld [vmem:[%s15 + $0x68] sm:$0xf]
    %v1152 = vld [vmem:[%s15 + $0x6c] sm:$0xf]
    %v1153 = vld [vmem:[%s15 + $0x70] sm:$0xf]
    %v1154 = vld [vmem:[%s15 + $0x74] sm:$0xf]
    %v1155 = vld [vmem:[%s15 + $0x78] sm:$0xf]
    %v1156 = vld [vmem:[%s15 + $0x7c] sm:$0xf]
    %v1157 = vld [vmem:[%s15 + $0x80] sm:$0xf]
    %v1158 = vld [vmem:[%s15 + $0x84] sm:$0xf]
    %v1159 = vld [vmem:[%s15 + $0x88] sm:$0xf]
    %v1160 = vld [vmem:[%s15 + $0x8c] sm:$0xf]
    %v1161 = vld [vmem:[%s15 + $0x90] sm:$0xf]
    %v1162 = vld [vmem:[%s15 + $0x94] sm:$0xf]
    %v1163 = vld [vmem:[%s15 + $0x98] sm:$0xf]
    %v1164 = vld [vmem:[%s15 + $0x9c] sm:$0xf]
    %v1165 = vld [vmem:[%s15 + $0xa0] sm:$0xf]
    %v1166 = vld [vmem:[%s15 + $0xa4] sm:$0xf]
    %v1167 = vld [vmem:[%s15 + $0xa8] sm:$0xf]
    %v1168 = vld [vmem:[%s15 + $0xac] sm:$0xf]
    %v1169 = vld [vmem:[%s15 + $0xb0] sm:$0xf]
    %v1170 = vld [vmem:[%s15 + $0xb4] sm:$0xf]
    %v1171 = vld [vmem:[%s15 + $0xb8] sm:$0xf]
    %v1172 = vld [vmem:[%s15 + $0xbc] sm:$0xf]
    %v1173 = vld [vmem:[%s15 + $0xc0] sm:$0xf]
    %v1174 = vld [vmem:[%s15 + $0xc4] sm:$0xf]
    %v1175 = vld [vmem:[%s15 + $0xc8] sm:$0xf]
    %v1176 = vld [vmem:[%s15 + $0xcc] sm:$0xf]
    %v1177 = vld [vmem:[%s15 + $0xd0] sm:$0xf]
    %v1178 = vld [vmem:[%s15 + $0xd4] sm:$0xf]
    %v1179 = vld [vmem:[%s15 + $0xd8] sm:$0xf]
    %v1180 = vld [vmem:[%s15 + $0xdc] sm:$0xf]
    %v1181 = vld [vmem:[%s15 + $0xe0] sm:$0xf]
    %v1182 = vld [vmem:[%s15 + $0xe4] sm:$0xf]
    %v1183 = vld [vmem:[%s15 + $0xe8] sm:$0xf]
    %v1184 = vld [vmem:[%s15 + $0xec] sm:$0xf]
    %v1185 = vld [vmem:[%s15 + $0xf0] sm:$0xf]
    %v1186 = vld [vmem:[%s15 + $0xf4] sm:$0xf]
    %v1187 = vld [vmem:[%s15 + $0xf8] sm:$0xf]
    %v1188 = vld [vmem:[%s15 + $0xfc] sm:$0xf]
    %v1189 = vunpack.c.l.bf16 %v1125
    %v1190 = vunpack.c.l.bf16 %v1126
    %v1191 = vunpack.c.l.bf16 %v1127
    %v1192 = vunpack.c.l.bf16 %v1128
    %v1193 = vunpack.c.l.bf16 %v1129
    %v1194 = vunpack.c.l.bf16 %v1130
    %v1195 = vunpack.c.l.bf16 %v1131
    %v1196 = vunpack.c.l.bf16 %v1132
    %v1197 = vunpack.c.l.bf16 %v1133
    %v1198 = vunpack.c.l.bf16 %v1134
    %v1199 = vunpack.c.l.bf16 %v1135
    %v1200 = vunpack.c.l.bf16 %v1136
    %v1201 = vunpack.c.l.bf16 %v1137
    %v1202 = vunpack.c.l.bf16 %v1138
    %v1203 = vunpack.c.l.bf16 %v1139
    %v1204 = vunpack.c.l.bf16 %v1140
    %v1205 = vunpack.c.l.bf16 %v1141
    %v1206 = vunpack.c.l.bf16 %v1142
    %v1207 = vunpack.c.l.bf16 %v1143
    %v1208 = vunpack.c.l.bf16 %v1144
    %v1209 = vunpack.c.l.bf16 %v1145
    %v1210 = vunpack.c.l.bf16 %v1146
    %v1211 = vunpack.c.l.bf16 %v1147
    %v1212 = vunpack.c.l.bf16 %v1148
    %v1213 = vunpack.c.l.bf16 %v1149
    %v1214 = vunpack.c.l.bf16 %v1150
    %v1215 = vunpack.c.l.bf16 %v1151
    %v1216 = vunpack.c.l.bf16 %v1152
    %v1217 = vunpack.c.l.bf16 %v1153
    %v1218 = vunpack.c.l.bf16 %v1154
    %v1219 = vunpack.c.l.bf16 %v1155
    %v1220 = vunpack.c.l.bf16 %v1156
    %v1221 = vunpack.c.l.bf16 %v1157
    %v1222 = vunpack.c.l.bf16 %v1158
    %v1223 = vunpack.c.l.bf16 %v1159
    %v1224 = vunpack.c.l.bf16 %v1160
    %v1225 = vunpack.c.l.bf16 %v1161
    %v1226 = vunpack.c.l.bf16 %v1162
    %v1227 = vunpack.c.l.bf16 %v1163
    %v1228 = vunpack.c.l.bf16 %v1164
    %v1229 = vunpack.c.l.bf16 %v1165
    %v1230 = vunpack.c.l.bf16 %v1166
    %v1231 = vunpack.c.l.bf16 %v1167
    %v1232 = vunpack.c.l.bf16 %v1168
    %v1233 = vunpack.c.l.bf16 %v1169
    %v1234 = vunpack.c.l.bf16 %v1170
    %v1235 = vunpack.c.l.bf16 %v1171
    %v1236 = vunpack.c.l.bf16 %v1172
    %v1237 = vunpack.c.l.bf16 %v1173
    %v1238 = vunpack.c.l.bf16 %v1174
    %v1239 = vunpack.c.l.bf16 %v1175
    %v1240 = vunpack.c.l.bf16 %v1176
    %v1241 = vunpack.c.l.bf16 %v1177
    %v1242 = vunpack.c.l.bf16 %v1178
    %v1243 = vunpack.c.l.bf16 %v1179
    %v1244 = vunpack.c.l.bf16 %v1180
    %v1245 = vunpack.c.l.bf16 %v1181
    %v1246 = vunpack.c.l.bf16 %v1182
    %v1247 = vunpack.c.l.bf16 %v1183
    %v1248 = vunpack.c.l.bf16 %v1184
    %v1249 = vunpack.c.l.bf16 %v1185
    %v1250 = vunpack.c.l.bf16 %v1186
    %v1251 = vunpack.c.l.bf16 %v1187
    %v1252 = vunpack.c.l.bf16 %v1188
    %v1257 = vrot.slane %v1121, 4
    %v1258 = vrot.slane %v1122, 4
    %v1259 = vrot.slane %v1123, 4
    %v1260 = vrot.slane %v1124, 4
    %1265 = vmatprep.subr.mxu0 0.0
    %1266 = vmatpush1.msra.mxu0 %v1189
    %1267 = vmatprep.subr.mxu0 0.0
    %1268 = vmatpush1.msra.mxu0 %v1190
    %1269 = vmatprep.subr.mxu0 0.0
    %1270 = vmatpush1.msra.mxu0 %v1191
    %1271 = vmatprep.subr.mxu0 0.0
    %1272 = vmatpush1.msra.mxu0 %v1192
    %1273 = vmatprep.subr.mxu0 0.0
    %1274 = vmatpush1.msra.mxu0 %v1193
    %1275 = vmatprep.subr.mxu0 0.0
    %1276 = vmatpush1.msra.mxu0 %v1194
    %1277 = vmatprep.subr.mxu0 0.0
    %1278 = vmatpush1.msra.mxu0 %v1195
    %1279 = vmatprep.subr.mxu0 0.0
    %1280 = vmatpush1.msra.mxu0 %v1196
    %1281 = vmatprep.subr.mxu0 0.0
    %1282 = vmatpush1.msra.mxu0 %v1197
    %1283 = vmatprep.subr.mxu0 0.0
    %1284 = vmatpush1.msra.mxu0 %v1198
    %1285 = vmatprep.subr.mxu0 0.0
    %1286 = vmatpush1.msra.mxu0 %v1199
    %1287 = vmatprep.subr.mxu0 0.0
    %1288 = vmatpush1.msra.mxu0 %v1200
    %1289 = vmatprep.subr.mxu0 0.0
    %1290 = vmatpush1.msra.mxu0 %v1201
    %1291 = vmatprep.subr.mxu0 0.0
    %1292 = vmatpush1.msra.mxu0 %v1202
    %1293 = vmatprep.subr.mxu0 0.0
    %1294 = vmatpush1.msra.mxu0 %v1203
    %1295 = vmatprep.subr.mxu0 0.0
    %1296 = vmatpush1.msra.mxu0 %v1204
    %1297 = vmatprep.subr.mxu0 0.0
    %1298 = vmatpush1.msra.mxu0 %v1205
    %1299 = vmatprep.subr.mxu0 0.0
    %1300 = vmatpush1.msra.mxu0 %v1206
    %1301 = vmatprep.subr.mxu0 0.0
    %1302 = vmatpush1.msra.mxu0 %v1207
    %1303 = vmatprep.subr.mxu0 0.0
    %1304 = vmatpush1.msra.mxu0 %v1208
    %1305 = vmatprep.subr.mxu0 0.0
    %1306 = vmatpush1.msra.mxu0 %v1209
    %1307 = vmatprep.subr.mxu0 0.0
    %1308 = vmatpush1.msra.mxu0 %v1210
    %1309 = vmatprep.subr.mxu0 0.0
    %1310 = vmatpush1.msra.mxu0 %v1211
    %1311 = vmatprep.subr.mxu0 0.0
    %1312 = vmatpush1.msra.mxu0 %v1212
    %1313 = vmatprep.subr.mxu0 0.0
    %1314 = vmatpush1.msra.mxu0 %v1213
    %1315 = vmatprep.subr.mxu0 0.0
    %1316 = vmatpush1.msra.mxu0 %v1214
    %1317 = vmatprep.subr.mxu0 0.0
    %1318 = vmatpush1.msra.mxu0 %v1215
    %1319 = vmatprep.subr.mxu0 0.0
    %1320 = vmatpush1.msra.mxu0 %v1216
    %1321 = vmatprep.subr.mxu0 0.0
    %1322 = vmatpush1.msra.mxu0 %v1217
    %1323 = vmatprep.subr.mxu0 0.0
    %1324 = vmatpush1.msra.mxu0 %v1218
    %1325 = vmatprep.subr.mxu0 0.0
    %1326 = vmatpush1.msra.mxu0 %v1219
    %1327 = vmatprep.subr.mxu0 0.0
    %1328 = vmatpush1.msra.mxu0 %v1220
    %1329 = vmatprep.mubr.f32.mxu0 %v1258
    %1330 = vmatmul.mubr.f32.gmra.mrb[0].mxu0 %v1257
    %v1331 = vpop.f32.mrb[0].mxu0
    %v1332 = vadd.f32 0.0, %v1331
    %v1333 = vpop.f32.mrb[0].mxu0
    %1334 = vdwg.mxu0
    %1335 = vmatprep.subr.mxu0 0.0
    %1336 = vmatpush1.msra.mxu0 %v1221
    %1337 = vmatprep.subr.mxu0 0.0
    %1338 = vmatpush1.msra.mxu0 %v1222
    %1339 = vmatprep.subr.mxu0 0.0
    %1340 = vmatpush1.msra.mxu0 %v1223
    %1341 = vmatprep.subr.mxu0 0.0
    %1342 = vmatpush1.msra.mxu0 %v1224
    %1343 = vmatprep.subr.mxu0 0.0
    %1344 = vmatpush1.msra.mxu0 %v1225
    %1345 = vmatprep.subr.mxu0 0.0
    %1346 = vmatpush1.msra.mxu0 %v1226
    %1347 = vmatprep.subr.mxu0 0.0
    %1348 = vmatpush1.msra.mxu0 %v1227
    %1349 = vmatprep.subr.mxu0 0.0
    %1350 = vmatpush1.msra.mxu0 %v1228
    %1351 = vmatprep.subr.mxu0 0.0
    %1352 = vmatpush1.msra.mxu0 %v1229
    %1353 = vmatprep.subr.mxu0 0.0
    %1354 = vmatpush1.msra.mxu0 %v1230
    %1355 = vmatprep.subr.mxu0 0.0
    %1356 = vmatpush1.msra.mxu0 %v1231
    %1357 = vmatprep.subr.mxu0 0.0
    %1358 = vmatpush1.msra.mxu0 %v1232
    %1359 = vmatprep.subr.mxu0 0.0
    %1360 = vmatpush1.msra.mxu0 %v1233
    %1361 = vmatprep.subr.mxu0 0.0
    %1362 = vmatpush1.msra.mxu0 %v1234
    %1363 = vmatprep.subr.mxu0 0.0
    %1364 = vmatpush1.msra.mxu0 %v1235
    %1365 = vmatprep.subr.mxu0 0.0
    %1366 = vmatpush1.msra.mxu0 %v1236
    %1367 = vmatprep.subr.mxu0 0.0
    %1368 = vmatpush1.msra.mxu0 %v1237
    %1369 = vmatprep.subr.mxu0 0.0
    %1370 = vmatpush1.msra.mxu0 %v1238
    %1371 = vmatprep.subr.mxu0 0.0
    %1372 = vmatpush1.msra.mxu0 %v1239
    %1373 = vmatprep.subr.mxu0 0.0
    %1374 = vmatpush1.msra.mxu0 %v1240
    %1375 = vmatprep.subr.mxu0 0.0
    %1376 = vmatpush1.msra.mxu0 %v1241
    %1377 = vmatprep.subr.mxu0 0.0
    %1378 = vmatpush1.msra.mxu0 %v1242
    %1379 = vmatprep.subr.mxu0 0.0
    %1380 = vmatpush1.msra.mxu0 %v1243
    %1381 = vmatprep.subr.mxu0 0.0
    %1382 = vmatpush1.msra.mxu0 %v1244
    %1383 = vmatprep.subr.mxu0 0.0
    %1384 = vmatpush1.msra.mxu0 %v1245
    %1385 = vmatprep.subr.mxu0 0.0
    %1386 = vmatpush1.msra.mxu0 %v1246
    %1387 = vmatprep.subr.mxu0 0.0
    %1388 = vmatpush1.msra.mxu0 %v1247
    %1389 = vmatprep.subr.mxu0 0.0
    %1390 = vmatpush1.msra.mxu0 %v1248
    %1391 = vmatprep.subr.mxu0 0.0
    %1392 = vmatpush1.msra.mxu0 %v1249
    %1393 = vmatprep.subr.mxu0 0.0
    %1394 = vmatpush1.msra.mxu0 %v1250
    %1395 = vmatprep.subr.mxu0 0.0
    %1396 = vmatpush1.msra.mxu0 %v1251
    %1397 = vmatprep.subr.mxu0 0.0
    %1398 = vmatpush1.msra.mxu0 %v1252
    %1399 = vmatprep.mubr.f32.mxu0 %v1260
    %1400 = vmatmul.mubr.f32.gmra.mrb[0].mxu0 %v1259
    %v1401 = vpop.f32.mrb[0].mxu0
    %v1402 = vadd.f32 %v1332, %v1401
    %v1403 = vpop.f32.mrb[0].mxu0
    %1404 = vdwg.mxu0
    %v1405 = vld [vmem:[%s11] sm:$0xf]
    %v1406 = vld [vmem:[%s12] sm:$0xf]
    %1408 = vset.pattern.permute.xlu0 0
    %1409 = vperm.xlu0 %1408, %v1406
    %v1410 = vpop.permute.xlu0 %1409
    %v1413 = vsel %vm70, %v1405, 0
    %v1416 = vsel %vm74, %v1402, 0
    %1418 = vmatprep.subr.mxu0 0.0
    %1419 = vmatpush1.msra.mxu0 %v1416
    %1420 = vmatprep.subr.mxu0 0.0
    %1421 = vmatpush1.msra.mxu0 0.0
    %1422 = vmatprep.subr.mxu0 0.0
    %1423 = vmatpush1.msra.mxu0 0.0
    %1424 = vmatprep.subr.mxu0 0.0
    %1425 = vmatpush1.msra.mxu0 0.0
    %1426 = vmatprep.subr.mxu0 0.0
    %1427 = vmatpush1.msra.mxu0 0.0
    %1428 = vmatprep.subr.mxu0 0.0
    %1429 = vmatpush1.msra.mxu0 0.0
    %1430 = vmatprep.subr.mxu0 0.0
    %1431 = vmatpush1.msra.mxu0 0.0
    %1432 = vmatprep.subr.mxu0 0.0
    %1433 = vmatpush1.msra.mxu0 0.0
    %1434 = vmatprep.subr.mxu0 0.0
    %1435 = vmatpush1.msra.mxu0 0.0
    %1436 = vmatprep.subr.mxu0 0.0
    %1437 = vmatpush1.msra.mxu0 0.0
    %1438 = vmatprep.subr.mxu0 0.0
    %1439 = vmatpush1.msra.mxu0 0.0
    %1440 = vmatprep.subr.mxu0 0.0
    %1441 = vmatpush1.msra.mxu0 0.0
    %1442 = vmatprep.subr.mxu0 0.0
    %1443 = vmatpush1.msra.mxu0 0.0
    %1444 = vmatprep.subr.mxu0 0.0
    %1445 = vmatpush1.msra.mxu0 0.0
    %1446 = vmatprep.subr.mxu0 0.0
    %1447 = vmatpush1.msra.mxu0 0.0
    %1448 = vmatprep.subr.mxu0 0.0
    %1449 = vmatpush1.msra.mxu0 0.0
    %1450 = vmatprep.subr.mxu0 0.0
    %1451 = vmatpush1.msra.mxu0 0.0
    %1452 = vmatprep.subr.mxu0 0.0
    %1453 = vmatpush1.msra.mxu0 0.0
    %1454 = vmatprep.subr.mxu0 0.0
    %1455 = vmatpush1.msra.mxu0 0.0
    %1456 = vmatprep.subr.mxu0 0.0
    %1457 = vmatpush1.msra.mxu0 0.0
    %1458 = vmatprep.subr.mxu0 0.0
    %1459 = vmatpush1.msra.mxu0 0.0
    %1460 = vmatprep.subr.mxu0 0.0
    %1461 = vmatpush1.msra.mxu0 0.0
    %1462 = vmatprep.subr.mxu0 0.0
    %1463 = vmatpush1.msra.mxu0 0.0
    %1464 = vmatprep.subr.mxu0 0.0
    %1465 = vmatpush1.msra.mxu0 0.0
    %1466 = vmatprep.subr.mxu0 0.0
    %1467 = vmatpush1.msra.mxu0 0.0
    %1468 = vmatprep.subr.mxu0 0.0
    %1469 = vmatpush1.msra.mxu0 0.0
    %1470 = vmatprep.subr.mxu0 0.0
    %1471 = vmatpush1.msra.mxu0 0.0
    %1472 = vmatprep.subr.mxu0 0.0
    %1473 = vmatpush1.msra.mxu0 0.0
    %1474 = vmatprep.subr.mxu0 0.0
    %1475 = vmatpush1.msra.mxu0 0.0
    %1476 = vmatprep.subr.mxu0 0.0
    %1477 = vmatpush1.msra.mxu0 0.0
    %1478 = vmatprep.subr.mxu0 0.0
    %1479 = vmatpush1.msra.mxu0 0.0
    %1480 = vmatprep.subr.mxu0 0.0
    %1481 = vmatpush1.msra.mxu0 0.0
    %1482 = vmatprep.mubr.f32.mxu0 0.0
    %1483 = vmatmul.mubr.f32.gmra.mrb[0].mxu0 %v1413
    %v1484 = vpop.f32.mrb[0].mxu0
    %v1485 = vadd.f32 %v1410, %v1484
    %v1486 = vpop.f32.mrb[0].mxu0
    %1487 = vdwg.mxu0
    %v1488 = vmax.f32 %v1485, 0.0
    %v1489 = vld [vmem:[%s16] sm:$0xff]
    %v1490 = vld [vmem:[%s16 + $0x8] sm:$0xff]
    %v1491 = vld [vmem:[%s16 + $0x10] sm:$0xff]
    %v1492 = vld [vmem:[%s16 + $0x18] sm:$0xff]
    %v1493 = vld [vmem:[%s16 + $0x20] sm:$0xff]
    %v1494 = vld [vmem:[%s16 + $0x28] sm:$0xff]
    %v1495 = vld [vmem:[%s16 + $0x30] sm:$0xff]
    %v1496 = vld [vmem:[%s16 + $0x38] sm:$0xff]
    %v1497 = vunpack.c.l.bf16 %v1489
    %v1498 = vunpack.c.h.bf16 %v1489
    %v1499 = vunpack.c.l.bf16 %v1490
    %v1500 = vunpack.c.h.bf16 %v1490
    %v1501 = vunpack.c.l.bf16 %v1491
    %v1502 = vunpack.c.h.bf16 %v1491
    %v1503 = vunpack.c.l.bf16 %v1492
    %v1504 = vunpack.c.h.bf16 %v1492
    %v1505 = vunpack.c.l.bf16 %v1493
    %v1506 = vunpack.c.h.bf16 %v1493
    %v1507 = vunpack.c.l.bf16 %v1494
    %v1508 = vunpack.c.h.bf16 %v1494
    %v1509 = vunpack.c.l.bf16 %v1495
    %v1510 = vunpack.c.h.bf16 %v1495
    %v1511 = vunpack.c.l.bf16 %v1496
    %v1512 = vunpack.c.h.bf16 %v1496
    %v1514 = vsel %vm774, %v1488, 0
    %1516 = vmatprep.subr.mxu0 %v1498
    %1517 = vmatpush1.msra.mxu0 %v1497
    %1518 = vmatprep.subr.mxu0 %v1502
    %1519 = vmatpush1.msra.mxu0 %v1501
    %1520 = vmatprep.subr.mxu0 %v1506
    %1521 = vmatpush1.msra.mxu0 %v1505
    %1522 = vmatprep.subr.mxu0 %v1510
    %1523 = vmatpush1.msra.mxu0 %v1509
    %1524 = vmatprep.subr.mxu0 0.0
    %1525 = vmatpush1.msra.mxu0 0.0
    %1526 = vmatprep.subr.mxu0 0.0
    %1527 = vmatpush1.msra.mxu0 0.0
    %1528 = vmatprep.subr.mxu0 0.0
    %1529 = vmatpush1.msra.mxu0 0.0
    %1530 = vmatprep.subr.mxu0 0.0
    %1531 = vmatpush1.msra.mxu0 0.0
    %1532 = vmatprep.subr.mxu0 0.0
    %1533 = vmatpush1.msra.mxu0 0.0
    %1534 = vmatprep.subr.mxu0 0.0
    %1535 = vmatpush1.msra.mxu0 0.0
    %1536 = vmatprep.subr.mxu0 0.0
    %1537 = vmatpush1.msra.mxu0 0.0
    %1538 = vmatprep.subr.mxu0 0.0
    %1539 = vmatpush1.msra.mxu0 0.0
    %1540 = vmatprep.subr.mxu0 0.0
    %1541 = vmatpush1.msra.mxu0 0.0
    %1542 = vmatprep.subr.mxu0 0.0
    %1543 = vmatpush1.msra.mxu0 0.0
    %1544 = vmatprep.subr.mxu0 0.0
    %1545 = vmatpush1.msra.mxu0 0.0
    %1546 = vmatprep.subr.mxu0 0.0
    %1547 = vmatpush1.msra.mxu0 0.0
    %1548 = vmatprep.subr.mxu0 0.0
    %1549 = vmatpush1.msra.mxu0 0.0
    %1550 = vmatprep.subr.mxu0 0.0
    %1551 = vmatpush1.msra.mxu0 0.0
    %1552 = vmatprep.subr.mxu0 0.0
    %1553 = vmatpush1.msra.mxu0 0.0
    %1554 = vmatprep.subr.mxu0 0.0
    %1555 = vmatpush1.msra.mxu0 0.0
    %1556 = vmatprep.subr.mxu0 0.0
    %1557 = vmatpush1.msra.mxu0 0.0
    %1558 = vmatprep.subr.mxu0 0.0
    %1559 = vmatpush1.msra.mxu0 0.0
    %1560 = vmatprep.subr.mxu0 0.0
    %1561 = vmatpush1.msra.mxu0 0.0
    %1562 = vmatprep.subr.mxu0 0.0
    %1563 = vmatpush1.msra.mxu0 0.0
    %1564 = vmatprep.subr.mxu0 0.0
    %1565 = vmatpush1.msra.mxu0 0.0
    %1566 = vmatprep.subr.mxu0 0.0
    %1567 = vmatpush1.msra.mxu0 0.0
    %1568 = vmatprep.subr.mxu0 0.0
    %1569 = vmatpush1.msra.mxu0 0.0
    %1570 = vmatprep.subr.mxu0 0.0
    %1571 = vmatpush1.msra.mxu0 0.0
    %1572 = vmatprep.subr.mxu0 0.0
    %1573 = vmatpush1.msra.mxu0 0.0
    %1574 = vmatprep.subr.mxu0 0.0
    %1575 = vmatpush1.msra.mxu0 0.0
    %1576 = vmatprep.subr.mxu0 0.0
    %1577 = vmatpush1.msra.mxu0 0.0
    %1578 = vmatprep.subr.mxu0 0.0
    %1579 = vmatpush1.msra.mxu0 0.0
    %1580 = vmatprep.mubr.f32.mxu0 0.0
    %1581 = vmatmul.mubr.f32.gmra.mrb[0].mxu0 %v1514
    %v1582 = vpop.f32.mrb[0].mxu0
    %v1583 = vadd.f32 0.0, %v1582
    %v1584 = vpop.f32.mrb[0].mxu0
    %v1585 = vadd.f32 0.0, %v1584
    %1586 = vdwg.mxu0
    %1587 = vmatprep.subr.mxu0 %v1500
    %1588 = vmatpush1.msra.mxu0 %v1499
    %1589 = vmatprep.subr.mxu0 %v1504
    %1590 = vmatpush1.msra.mxu0 %v1503
    %1591 = vmatprep.subr.mxu0 %v1508
    %1592 = vmatpush1.msra.mxu0 %v1507
    %1593 = vmatprep.subr.mxu0 %v1512
    %1594 = vmatpush1.msra.mxu0 %v1511
    %1595 = vmatprep.subr.mxu0 0.0
    %1596 = vmatpush1.msra.mxu0 0.0
    %1597 = vmatprep.subr.mxu0 0.0
    %1598 = vmatpush1.msra.mxu0 0.0
    %1599 = vmatprep.subr.mxu0 0.0
    %1600 = vmatpush1.msra.mxu0 0.0
    %1601 = vmatprep.subr.mxu0 0.0
    %1602 = vmatpush1.msra.mxu0 0.0
    %1603 = vmatprep.subr.mxu0 0.0
    %1604 = vmatpush1.msra.mxu0 0.0
    %1605 = vmatprep.subr.mxu0 0.0
    %1606 = vmatpush1.msra.mxu0 0.0
    %1607 = vmatprep.subr.mxu0 0.0
    %1608 = vmatpush1.msra.mxu0 0.0
    %1609 = vmatprep.subr.mxu0 0.0
    %1610 = vmatpush1.msra.mxu0 0.0
    %1611 = vmatprep.subr.mxu0 0.0
    %1612 = vmatpush1.msra.mxu0 0.0
    %1613 = vmatprep.subr.mxu0 0.0
    %1614 = vmatpush1.msra.mxu0 0.0
    %1615 = vmatprep.subr.mxu0 0.0
    %1616 = vmatpush1.msra.mxu0 0.0
    %1617 = vmatprep.subr.mxu0 0.0
    %1618 = vmatpush1.msra.mxu0 0.0
    %1619 = vmatprep.subr.mxu0 0.0
    %1620 = vmatpush1.msra.mxu0 0.0
    %1621 = vmatprep.subr.mxu0 0.0
    %1622 = vmatpush1.msra.mxu0 0.0
    %1623 = vmatprep.subr.mxu0 0.0
    %1624 = vmatpush1.msra.mxu0 0.0
    %1625 = vmatprep.subr.mxu0 0.0
    %1626 = vmatpush1.msra.mxu0 0.0
    %1627 = vmatprep.subr.mxu0 0.0
    %1628 = vmatpush1.msra.mxu0 0.0
    %1629 = vmatprep.subr.mxu0 0.0
    %1630 = vmatpush1.msra.mxu0 0.0
    %1631 = vmatprep.subr.mxu0 0.0
    %1632 = vmatpush1.msra.mxu0 0.0
    %1633 = vmatprep.subr.mxu0 0.0
    %1634 = vmatpush1.msra.mxu0 0.0
    %1635 = vmatprep.subr.mxu0 0.0
    %1636 = vmatpush1.msra.mxu0 0.0
    %1637 = vmatprep.subr.mxu0 0.0
    %1638 = vmatpush1.msra.mxu0 0.0
    %1639 = vmatprep.subr.mxu0 0.0
    %1640 = vmatpush1.msra.mxu0 0.0
    %1641 = vmatprep.subr.mxu0 0.0
    %1642 = vmatpush1.msra.mxu0 0.0
    %1643 = vmatprep.subr.mxu0 0.0
    %1644 = vmatpush1.msra.mxu0 0.0
    %1645 = vmatprep.subr.mxu0 0.0
    %1646 = vmatpush1.msra.mxu0 0.0
    %1647 = vmatprep.subr.mxu0 0.0
    %1648 = vmatpush1.msra.mxu0 0.0
    %1649 = vmatprep.subr.mxu0 0.0
    %1650 = vmatpush1.msra.mxu0 0.0
    %1651 = vmatprep.mubr.f32.mxu0 0.0
    %1652 = vmatmul.mubr.f32.gmra.mrb[0].mxu0 %v1514
    %v1653 = vpop.f32.mrb[0].mxu0
    %v1654 = vadd.f32 0.0, %v1653
    %v1655 = vpop.f32.mrb[0].mxu0
    %v1656 = vadd.f32 0.0, %v1655
    %1657 = vdwg.mxu0
    %v1662 = vrot.slane %v1583, 4
    %v1663 = vrot.slane %v1585, 4
    %v1664 = vrot.slane %v1654, 4
    %v1665 = vrot.slane %v1656, 4
    %v1670 = vsel %vm74, %v845, %v1662
    %v1671 = vsel %vm74, %v847, %v1663
    %v1672 = vsel %vm74, %v916, %v1664
    %v1673 = vsel %vm74, %v918, %v1665
    %v1674 = vadd.f32 %v225, %v1670
    %v1675 = vadd.f32 %v226, %v1671
    %v1676 = vadd.f32 %v227, %v1672
    %v1677 = vadd.f32 %v228, %v1673
    %1678 = vst [vmem:[#allocation2] sm:$0xff] %v1674
    %1679 = vst [vmem:[#allocation2 + $0x8] sm:$0xff] %v1675
    %1680 = vst [vmem:[#allocation2 + $0x10] sm:$0xff] %v1676
    %1681 = vst [vmem:[#allocation2 + $0x18] sm:$0xff] %v1677
    // Predicated region
    $region70: #{tpu_custom_call.1} parent=1 // pred_check
      _
    $region71: #{tpu_custom_call.1} parent=1 // pred_check_branch
      %1683 = sbr.rel (0) target = $region73
    $region72: #{tpu_custom_call.1} parent=1 // pred_region
      %s1685 = ssub.s32 512, 512
      %1686 = vsyncadd [#allocation3], %s1685
      %s1688 = sshll.u32 [#allocation2], 4
      %s1689 = int_to_ptr.vmem [resolvable:$true] %s1688
      %1691 = dma.vmem_to_hbm [thread:$0]  %s1689, 512, %s17, [#allocation3]
    $region73: #{tpu_custom_call.1} parent=1 // pred_fallthru
      _
    // Predicated region
    $region74: #{tpu_custom_call.1} parent=1 // pred_check
      _
    $region75: #{tpu_custom_call.1} parent=1 // pred_check_branch
      %1693 = sbr.rel (0) target = $region77
    $region76: #{tpu_custom_call.1} parent=1 // pred_region
      %1694 = dma.done [#allocation3], 512
    $region77: #{tpu_custom_call.1} parent=1 // pred_fallthru
      _
    %1695 = vsyncpa [#allocation3], 1

</llo_original>
